<compile_context>
chip_gen: v7x
topology: tpu7x:2x2x1
jax: 0.10.0
libtpu: 0.0.40
codegen_flags: <defaults>
</compile_context>

<pallas_src>
import math
import functools

import jax
import jax.numpy as jnp
import numpy as np
from jax import lax
from jax.experimental import pallas as pl
from jax.experimental.pallas import tpu as pltpu


# ----------------------------------------------------------------------------
# Parameter construction (plain JAX glue): gaussian orthogonal random matrix.
# One-time buffer init, mirrors gaussian_orthogonal_random_matrix().
# ----------------------------------------------------------------------------
def gaussian_orthogonal_random_matrix(key, nb_rows, nb_columns, scaling=0):
    nb_full_blocks = nb_rows // nb_columns
    keys = jax.random.split(key, nb_full_blocks + 2)
    blocks = []
    for i in range(nb_full_blocks):
        unstructured = jax.random.normal(keys[i], (nb_columns, nb_columns), jnp.float32)
        q, _ = jnp.linalg.qr(unstructured)
        blocks.append(q.T)
    remaining = nb_rows - nb_full_blocks * nb_columns
    if remaining > 0:
        unstructured = jax.random.normal(
            keys[nb_full_blocks], (nb_columns, nb_columns), jnp.float32
        )
        q, _ = jnp.linalg.qr(unstructured)
        blocks.append(q.T[:remaining])
    final_matrix = jnp.concatenate(blocks, axis=0)
    if scaling == 0:
        multiplier = jnp.linalg.norm(
            jax.random.normal(keys[-1], (nb_rows, nb_columns), jnp.float32), axis=1
        )
    elif scaling == 1:
        multiplier = math.sqrt(float(nb_columns)) * jnp.ones((nb_rows,), jnp.float32)
    else:
        raise ValueError(f"Invalid scaling {scaling}")
    return multiplier[:, None] * final_matrix


# ----------------------------------------------------------------------------
# Pass 1: key-side reduction.  For each (b, h), iterate kv tiles, maintain the
# running global max (flash-style rescaling) and accumulate directly into the
# VMEM-resident f32 output blocks:
#   ctx[m, e]  = sum_n exp(k_dash - diag - max) * v        (features x head_dim)
#   ksum[1, m] = sum_n exp(k_dash - diag - max)            (denominator column)
# The +eps term (added after the exp in the reference, independent of the max)
# is accumulated separately from the already-resident v tile and folded in at
# finalize, together with the ratio scale.
# ----------------------------------------------------------------------------
def _kv_context_kernel(k_ref, v_ref, pt_ref, cmask_ref, ctx_ref, ksum_ref,
                       sv_sc, m_sc, *, seq_tile, seq_len, nb_features, eps,
                       ratio, half_norm_sq, needs_col_mask, ragged):
    kv = pl.program_id(2)

    @pl.when(kv == 0)
    def _init():
        m_sc[...] = jnp.full_like(m_sc, -jnp.inf)
        sv_sc[...] = jnp.zeros_like(sv_sc)
        ctx_ref[...] = jnp.zeros_like(ctx_ref)
        ksum_ref[...] = jnp.zeros_like(ksum_ref)

    k = k_ref[...]                                   # (tn, d)   compute dtype
    v = v_ref[...]                                   # (tn, e)   compute dtype
    pt = pt_ref[...]                                 # (d, m_pad) compute dtype

    # Random-feature projection on the MXU (d**-0.25 pre-folded into pt).
    k_dash = jnp.dot(k, pt, preferred_element_type=jnp.float32)      # (tn, m_pad)

    kf = k.astype(jnp.float32)
    diag_k = jnp.sum(kf * kf, axis=-1, keepdims=True) * half_norm_sq  # (tn, 1)

    # Padded feature columns (and padded tail rows when ragged) -> -inf, so
    # they are excluded from the max and vanish after the exp.
    masked = k_dash + cmask_ref[...]                 # (1, m_pad) broadcast add
    if ragged:
        row = lax.broadcasted_iota(jnp.int32, (masked.shape[0], 1), 0) + kv * seq_tile
        masked = jnp.where(row < seq_len, masked, -jnp.inf)

    # Online global max over the whole (n, m_real) slab of this (b, h).
    tile_max = jnp.max(jnp.max(masked, axis=-1, keepdims=True), axis=0, keepdims=True)
    m_prev = m_sc[...]
    m_new = jnp.maximum(m_prev, tile_max)
    alpha = jnp.exp(m_prev - m_new)                  # (1, 1)

    p = jnp.exp(masked - diag_k - m_new)             # (tn, m_pad) f32, padded -> 0
    p_lp = p.astype(v.dtype)                         # low precision for the MXU

    # (m_pad, e) += p^T @ v   (contraction over the sequence-tile rows, f32 acc)
    ctx_ref[...] = ctx_ref[...] * alpha + lax.dot_general(
        p_lp, v, (((0,), (0,)), ((), ())), preferred_element_type=jnp.float32)
    # (1, m_pad) += column sums of p  (denominator / key cumsum per feature)
    ksum_ref[...] = ksum_ref[...] * alpha + jnp.sum(p, axis=0, keepdims=True)
    # eps term uses the v tile already in VMEM (no extra HBM traffic).
    sv_sc[...] = sv_sc[...] + jnp.sum(v.astype(jnp.float32), axis=0, keepdims=True)
    m_sc[...] = m_new

    @pl.when(kv == pl.num_programs(2) - 1)
    def _finalize():
        sv = sv_sc[...]                              # (1, e)
        if needs_col_mask:
            # Restrict the eps term to real feature rows/columns.
            fvalid = (lax.broadcasted_iota(jnp.int32, (ctx_ref.shape[0], 1), 0)
                      < nb_features).astype(jnp.float32)          # (m_pad, 1)
            colmul = jnp.exp(cmask_ref[...])                      # (1, m_pad) 1/0
            ctx_ref[...] = (ctx_ref[...] + (eps * fvalid) * sv) * ratio
            ksum_ref[...] = (ksum_ref[...] + (eps * float(seq_len)) * colmul) * ratio
        else:
            ctx_ref[...] = (ctx_ref[...] + eps * sv) * ratio
            ksum_ref[...] = (ksum_ref[...] + eps * float(seq_len)) * ratio


# ----------------------------------------------------------------------------
# Pass 2: query side, fully parallel over (b, h, seq tiles).  One MXU dot
# against the context; denominator is a broadcast multiply + lane reduce.
# ----------------------------------------------------------------------------
def _q_output_kernel(q_ref, ctx_ref, ksum_ref, pt_ref, cmask_ref, o_ref,
                     *, eps, ratio, half_norm_sq):
    q = q_ref[...]                                   # (tq, d)   compute dtype
    pt = pt_ref[...]                                 # (d, m_pad)

    q_dash = jnp.dot(q, pt, preferred_element_type=jnp.float32)      # (tq, m_pad)

    qf = q.astype(jnp.float32)
    diag_q = jnp.sum(qf * qf, axis=-1, keepdims=True) * half_norm_sq  # (tq, 1)

    masked = q_dash + cmask_ref[...]                 # padded feature cols -> -inf
    row_max = jnp.max(masked, axis=-1, keepdims=True)

    # Padded feature columns come out as ratio*eps, but the matching rows of
    # ctx / columns of ksum are exactly zero, so they contribute nothing.
    q_prime = ratio * (jnp.exp(masked - diag_q - row_max) + eps)      # (tq, m_pad) f32

    num = jnp.dot(q_prime.astype(ctx_ref.dtype), ctx_ref[...],
                  preferred_element_type=jnp.float32)                 # (tq, e)
    den = jnp.sum(q_prime * ksum_ref[...], axis=-1, keepdims=True)    # (tq, 1) f32
    d_inv = pl.reciprocal(den, approx=True)                           # EUP
    o_ref[...] = (num * d_inv).astype(o_ref.dtype)


# ----------------------------------------------------------------------------
# Wrapper
# ----------------------------------------------------------------------------
def fast_attention(q, k, v, projection_matrix, *, eps=1e-4, max_seq_tile=1024,
                   compute_dtype=jnp.bfloat16,
                   vmem_limit_bytes=48 * 1024 * 1024):
    b, h, n, d = q.shape
    e = v.shape[-1]
    out_dtype = q.dtype
    m_real = projection_matrix.shape[0]
    m_pad = ((m_real + 127) // 128) * 128
    needs_col_mask = (m_pad != m_real)

    data_normalizer = float(d) ** -0.25
    ratio = float(m_real) ** -0.5            # uses the REAL nb_features
    half_norm_sq = 0.5 * float(d) ** -0.5    # = 0.5 * data_normalizer ** 2

    # HBM-bound kernel: ship the big streams at reduced precision; all exp /
    # max / accumulation math stays in f32 inside the kernels.
    cdt = jnp.dtype(compute_dtype)
    qc, kc, vc = (x.astype(cdt) for x in (q, k, v))

    # Pad the projection to a lane-aligned feature count, pre-scale and
    # pre-transpose it once (hoisted out of the grid loop).
    proj = projection_matrix.astype(jnp.float32)
    if needs_col_mask:
        proj = jnp.pad(proj, ((0, m_pad - m_real), (0, 0)))
    proj_t = (data_normalizer * proj).T.astype(cdt)                    # (d, m_pad)

    # Additive feature-padding mask row: 0 for real features, -inf for padding.
    cmask = jnp.where(jnp.arange(m_pad) < m_real, 0.0, -jnp.inf)
    cmask = cmask.astype(jnp.float32).reshape(1, m_pad)

    # cdiv grid over the sequence; pad the ragged tail in the wrapper (padded
    # rows are re-masked inside pass 1 so they never leak into the context).
    max_seq_tile = max(8, (int(max_seq_tile) // 8) * 8)
    seq_tile = min(max_seq_tile, ((n + 7) // 8) * 8)
    n_tiles = pl.cdiv(n, seq_tile)
    n_pad = n_tiles * seq_tile
    ragged = (n_pad != n)
    if ragged:
        pad = ((0, 0), (0, 0), (0, n_pad - n), (0, 0))
        qc, kc, vc = (jnp.pad(x, pad) for x in (qc, kc, vc))

    csize = cdt.itemsize
    proj_flops = 2 * b * h * n_pad * d * m_pad
    ctx_flops = 2 * b * h * n_pad * m_pad * (e + 1)
    trans = b * h * n_pad * m_pad

    # (b, h) are the parallel axes; on v7x both TensorCores get work as long as
    # b*h >= 2.  The kv axis is a revisited (accumulating) reduction.
    cp_red = pltpu.CompilerParams(
        dimension_semantics=("parallel", "parallel", "arbitrary"),
        vmem_limit_bytes=vmem_limit_bytes,
    )
    cp_par = pltpu.CompilerParams(
        dimension_semantics=("parallel", "parallel", "parallel"),
        vmem_limit_bytes=vmem_limit_bytes,
    )

    kern1 = functools.partial(
        _kv_context_kernel, seq_tile=seq_tile, seq_len=n, nb_features=m_real,
        eps=eps, ratio=ratio, half_norm_sq=half_norm_sq,
        needs_col_mask=needs_col_mask, ragged=ragged)

    # ---- pass 1: per-(b,h) key-side reduction over sequence tiles ----
    ctx_f32, ksum_f32 = pl.pallas_call(
        kern1,
        out_shape=(jax.ShapeDtypeStruct((b, h, m_pad, e), jnp.float32),
                   jax.ShapeDtypeStruct((b, h, 1, m_pad), jnp.float32)),
        grid_spec=pltpu.PrefetchScalarGridSpec(
            num_scalar_prefetch=0,
            grid=(b, h, n_tiles),
            in_specs=[
                pl.BlockSpec((None, None, seq_tile, d), lambda bi, hi, ki: (bi, hi, ki, 0)),
                pl.BlockSpec((None, None, seq_tile, e), lambda bi, hi, ki: (bi, hi, ki, 0)),
                pl.BlockSpec((d, m_pad), lambda bi, hi, ki: (0, 0)),
                pl.BlockSpec((1, m_pad), lambda bi, hi, ki: (0, 0)),
            ],
            out_specs=[
                pl.BlockSpec((None, None, m_pad, e), lambda bi, hi, ki: (bi, hi, 0, 0)),
                pl.BlockSpec((None, None, 1, m_pad), lambda bi, hi, ki: (bi, hi, 0, 0)),
            ],
            scratch_shapes=[
                pltpu.VMEM((1, e), jnp.float32),   # sum of v rows (eps term)
                pltpu.VMEM((1, 1), jnp.float32),   # running global max
            ],
        ),
        compiler_params=cp_red,
        cost_estimate=pl.CostEstimate(
            flops=int(proj_flops + ctx_flops),
            transcendentals=int(trans),
            bytes_accessed=int(b * h * n_pad * (d + e) * csize
                               + d * m_pad * csize
                               + b * h * m_pad * (e + 1) * 4),
        ),
    )(kc, vc, proj_t, cmask)

    # Tiny (m_pad x e) arrays: one cast so pass 2's main dot runs in bf16.
    ctx_c = ctx_f32.astype(cdt)

    kern2 = functools.partial(_q_output_kernel, eps=eps, ratio=ratio,
                              half_norm_sq=half_norm_sq)

    # ---- pass 2: query side, fully parallel over (b, h, seq tiles) ----
    out = pl.pallas_call(
        kern2,
        out_shape=jax.ShapeDtypeStruct((b, h, n_pad, e), out_dtype),
        grid_spec=pltpu.PrefetchScalarGridSpec(
            num_scalar_prefetch=0,
            grid=(b, h, n_tiles),
            in_specs=[
                pl.BlockSpec((None, None, seq_tile, d), lambda bi, hi, qi: (bi, hi, qi, 0)),
                pl.BlockSpec((None, None, m_pad, e), lambda bi, hi, qi: (bi, hi, 0, 0)),
                pl.BlockSpec((None, None, 1, m_pad), lambda bi, hi, qi: (bi, hi, 0, 0)),
                pl.BlockSpec((d, m_pad), lambda bi, hi, qi: (0, 0)),
                pl.BlockSpec((1, m_pad), lambda bi, hi, qi: (0, 0)),
            ],
            out_specs=pl.BlockSpec((None, None, seq_tile, e),
                                   lambda bi, hi, qi: (bi, hi, qi, 0)),
        ),
        compiler_params=cp_par,
        cost_estimate=pl.CostEstimate(
            flops=int(proj_flops + ctx_flops),
            transcendentals=int(trans),
            bytes_accessed=int(b * h * n_pad * d * csize
                               + b * h * m_pad * (e + 1) * csize
                               + d * m_pad * csize
                               + b * h * n_pad * e * out_dtype.itemsize),
        ),
    )(qc, ctx_c, ksum_f32, proj_t, cmask)

    if ragged:
        out = out[:, :, :n, :]
    return out


# ----------------------------------------------------------------------------
# Pure-JAX reference (mirrors the PyTorch module) for a correctness check.
# ----------------------------------------------------------------------------
def _softmax_kernel_ref(data, projection_matrix, is_query, eps=1e-4):
    d = data.shape[-1]
    data_normalizer = float(d) ** -0.25
    ratio = float(projection_matrix.shape[0]) ** -0.5
    data_dash = jnp.einsum("bhid,jd->bhij", data_normalizer * data, projection_matrix)
    diag_data = jnp.sum(data ** 2, axis=-1) / 2.0 * data_normalizer ** 2
    diag_data = diag_data[..., None]
    if is_query:
        mx = jnp.max(data_dash, axis=-1, keepdims=True)
    else:
        mx = jnp.max(data_dash, axis=(-1, -2), keepdims=True)
    return ratio * (jnp.exp(data_dash - diag_data - mx) + eps)


def _fast_attention_ref(q, k, v, projection_matrix):
    qp = _softmax_kernel_ref(q, projection_matrix, is_query=True)
    kp = _softmax_kernel_ref(k, projection_matrix, is_query=False)
    k_cumsum = kp.sum(axis=-2)
    d_inv = 1.0 / jnp.einsum("...nd,...d->...n", qp, k_cumsum)
    context = jnp.einsum("...nd,...ne->...de", kp, v)
    return jnp.einsum("...de,...nd,...n->...ne", context, qp, d_inv)


if __name__ == "__main__":
    batch, heads, seq, dim_heads = 2, 2, 8, 32
    nb_features = int(dim_heads * math.log(dim_heads))  # default(None, ...) = 110

    key = jax.random.PRNGKey(0)
    kq, kk, kv_, kproj, kq2, kk2, kv2 = jax.random.split(key, 7)

    q = jax.random.normal(kq, (batch, heads, seq, dim_heads), jnp.float32)
    k = jax.random.normal(kk, (batch, heads, seq, dim_heads), jnp.float32)
    v = jax.random.normal(kv_, (batch, heads, seq, dim_heads), jnp.float32)
    projection_matrix = gaussian_orthogonal_random_matrix(
        kproj, nb_features, dim_heads, scaling=0
    )

    ref = _fast_attention_ref(q, k, v, projection_matrix)

    # 1) f32 compute path: tight check of the algorithm (approx reciprocal only).
    out_f32 = jax.block_until_ready(
        fast_attention(q, k, v, projection_matrix, compute_dtype=jnp.float32))
    np.testing.assert_allclose(np.asarray(out_f32), np.asarray(ref),
                               rtol=5e-3, atol=5e-3)

    # 2) default bandwidth-optimized bf16 compute path (looser tolerance).
    out_bf16 = jax.block_until_ready(fast_attention(q, k, v, projection_matrix))
    np.testing.assert_allclose(np.asarray(out_bf16), np.asarray(ref),
                               rtol=5e-2, atol=5e-2)

    # 3) multi-tile + ragged sequence path (n not a multiple of the tile).
    seq2 = 72
    q2 = jax.random.normal(kq2, (batch, heads, seq2, dim_heads), jnp.float32)
    k2 = jax.random.normal(kk2, (batch, heads, seq2, dim_heads), jnp.float32)
    v2 = jax.random.normal(kv2, (batch, heads, seq2, dim_heads), jnp.float32)
    ref2 = _fast_attention_ref(q2, k2, v2, projection_matrix)
    out2 = jax.block_until_ready(
        fast_attention(q2, k2, v2, projection_matrix,
                       compute_dtype=jnp.float32, max_seq_tile=32))
    np.testing.assert_allclose(np.asarray(out2), np.asarray(ref2),
                               rtol=5e-3, atol=5e-3)

    print("KERNEL_OK")
</pallas_src>

<mosaic_0001>
module attributes {stable_mosaic.version = 11 : i64} {
  func.func @_kv_context_kernel(%arg0: i32, %arg1: i32, %arg2: i32, %arg3: memref<1x1x8x32xf32, #tpu.memory_space<vmem>>, %arg4: memref<1x1x8x32xf32, #tpu.memory_space<vmem>>, %arg5: memref<32x128xf32, #tpu.memory_space<vmem>>, %arg6: memref<1x128xf32, #tpu.memory_space<vmem>>, %arg7: memref<1x1x128x32xf32, #tpu.memory_space<vmem>>, %arg8: memref<1x1x1x128xf32, #tpu.memory_space<vmem>>, %arg9: memref<1x32xf32, #tpu.memory_space<vmem>>, %arg10: memref<1x1xf32, #tpu.memory_space<vmem>>) attributes {dimension_semantics = [#tpu.dimension_semantics<parallel>, #tpu.dimension_semantics<parallel>, #tpu.dimension_semantics<arbitrary>], iteration_bounds = array<i64: 2, 2, 1>, scalar_prefetch = 0 : i64, scratch_operands = 2 : i64, tpu.core_type = #tpu.core_type<tc>, window_params = [{transform_indices = @transform_0, window_bounds = array<i64: 1, 1, 8, 32>}, {transform_indices = @transform_1, window_bounds = array<i64: 1, 1, 8, 32>}, {pipeline_mode = #tpu.pipeline_mode<synchronous>, transform_indices = @transform_2, window_bounds = array<i64: 32, 128>}, {pipeline_mode = #tpu.pipeline_mode<synchronous>, transform_indices = @transform_3, window_bounds = array<i64: 1, 128>}, {transform_indices = @transform_4, window_bounds = array<i64: 1, 1, 128, 32>}, {transform_indices = @transform_5, window_bounds = array<i64: 1, 1, 1, 128>}]} {
    %c0_i32 = arith.constant 0 : i32
    %0 = arith.cmpi eq, %arg2, %c0_i32 : i32
    %1 = arith.extui %0 : i1 to i32
    %c0_i32_0 = arith.constant 0 : i32
    %2 = arith.cmpi ne, %1, %c0_i32_0 : i32
    scf.if %2 {
      %cst_45 = arith.constant 0xFF800000 : f32
      %58 = vector.broadcast %cst_45 : f32 to vector<1x1xf32>
      %c0_46 = arith.constant 0 : index
      %c0_47 = arith.constant 0 : index
      %59 = vector.load %arg10[%c0_46, %c0_47] : memref<1x1xf32, #tpu.memory_space<vmem>>, vector<1x1xf32>
      tpu.vector_store %arg10[%c0_46, %c0_47], %58 {strides = array<i32>} : memref<1x1xf32, #tpu.memory_space<vmem>>, vector<1x1xf32>,
      %cst_48 = arith.constant 0.000000e+00 : f32
      %60 = vector.broadcast %cst_48 : f32 to vector<1x32xf32>
      %c0_49 = arith.constant 0 : index
      %c0_50 = arith.constant 0 : index
      %61 = vector.load %arg9[%c0_49, %c0_50] : memref<1x32xf32, #tpu.memory_space<vmem>>, vector<1x32xf32>
      tpu.vector_store %arg9[%c0_49, %c0_50], %60 {strides = array<i32>} : memref<1x32xf32, #tpu.memory_space<vmem>>, vector<1x32xf32>,
      %cst_51 = arith.constant 0.000000e+00 : f32
      %62 = vector.broadcast %cst_51 : f32 to vector<128x32xf32>
      %c0_52 = arith.constant 0 : index
      %c0_53 = arith.constant 0 : index
      %c0_54 = arith.constant 0 : index
      %c0_55 = arith.constant 0 : index
      %63 = vector.load %arg7[%c0_52, %c0_53, %c0_54, %c0_55] : memref<1x1x128x32xf32, #tpu.memory_space<vmem>>, vector<1x1x128x32xf32>
      %64 = vector.shape_cast %63 : vector<1x1x128x32xf32> to vector<128x32xf32>
      %65 = vector.shape_cast %62 : vector<128x32xf32> to vector<1x1x128x32xf32>
      tpu.vector_store %arg7[%c0_52, %c0_53, %c0_54, %c0_55], %65 {strides = array<i32>} : memref<1x1x128x32xf32, #tpu.memory_space<vmem>>, vector<1x1x128x32xf32>,
      %cst_56 = arith.constant 0.000000e+00 : f32
      %66 = vector.broadcast %cst_56 : f32 to vector<1x128xf32>
      %c0_57 = arith.constant 0 : index
      %c0_58 = arith.constant 0 : index
      %c0_59 = arith.constant 0 : index
      %c0_60 = arith.constant 0 : index
      %67 = vector.load %arg8[%c0_57, %c0_58, %c0_59, %c0_60] : memref<1x1x1x128xf32, #tpu.memory_space<vmem>>, vector<1x1x1x128xf32>
      %68 = vector.shape_cast %67 : vector<1x1x1x128xf32> to vector<1x128xf32>
      %69 = vector.shape_cast %66 : vector<1x128xf32> to vector<1x1x1x128xf32>
      tpu.vector_store %arg8[%c0_57, %c0_58, %c0_59, %c0_60], %69 {strides = array<i32>} : memref<1x1x1x128xf32, #tpu.memory_space<vmem>>, vector<1x1x1x128xf32>,
    } else {
    }
    %c0 = arith.constant 0 : index
    %c0_1 = arith.constant 0 : index
    %c0_2 = arith.constant 0 : index
    %c0_3 = arith.constant 0 : index
    %3 = vector.load %arg3[%c0, %c0_1, %c0_2, %c0_3] : memref<1x1x8x32xf32, #tpu.memory_space<vmem>>, vector<1x1x8x32xf32>
    %4 = vector.shape_cast %3 : vector<1x1x8x32xf32> to vector<8x32xf32>
    %c0_4 = arith.constant 0 : index
    %c0_5 = arith.constant 0 : index
    %c0_6 = arith.constant 0 : index
    %c0_7 = arith.constant 0 : index
    %5 = vector.load %arg4[%c0_4, %c0_5, %c0_6, %c0_7] : memref<1x1x8x32xf32, #tpu.memory_space<vmem>>, vector<1x1x8x32xf32>
    %6 = vector.shape_cast %5 : vector<1x1x8x32xf32> to vector<8x32xf32>
    %c0_8 = arith.constant 0 : index
    %c0_9 = arith.constant 0 : index
    %7 = vector.load %arg5[%c0_8, %c0_9] : memref<32x128xf32, #tpu.memory_space<vmem>>, vector<32x128xf32>
    %cst = arith.constant dense<0.000000e+00> : vector<8x128xf32>
    %8 = tpu.matmul %4, %7, %cst {dimension_numbers = #tpu.dot_dimension_numbers<[1], [0], [0], [1], [0, 0, 1, 1], [], []>} : vector<8x32xf32>, vector<32x128xf32>, vector<8x128xf32> -> vector<8x128xf32>
    %9 = arith.mulf %4, %4 : vector<8x32xf32>
    %cst_10 = arith.constant dense<0.000000e+00> : vector<8xf32>
    %10 = vector.multi_reduction <add>, %9, %cst_10 [1] : vector<8x32xf32> to vector<8xf32>
    %11 = vector.shape_cast %10 : vector<8xf32> to vector<8x1xf32>
    %cst_11 = arith.constant 0.0883883461 : f32
    %12 = vector.broadcast %cst_11 : f32 to vector<8x1xf32>
    %13 = arith.mulf %11, %12 : vector<8x1xf32>
    %c0_12 = arith.constant 0 : index
    %c0_13 = arith.constant 0 : index
    %14 = vector.load %arg6[%c0_12, %c0_13] : memref<1x128xf32, #tpu.memory_space<vmem>>, vector<1x128xf32>
    %15 = vector.broadcast %14 : vector<1x128xf32> to vector<8x128xf32>
    %16 = arith.addf %8, %15 : vector<8x128xf32>
    %cst_14 = arith.constant dense<0xFF800000> : vector<8xf32>
    %17 = vector.multi_reduction <maximumf>, %16, %cst_14 [1] : vector<8x128xf32> to vector<8xf32>
    %18 = vector.shape_cast %17 : vector<8xf32> to vector<8x1xf32>
    %cst_15 = arith.constant dense<0xFF800000> : vector<1xf32>
    %19 = vector.multi_reduction <maximumf>, %18, %cst_15 [0] : vector<8x1xf32> to vector<1xf32>
    %20 = vector.shape_cast %19 : vector<1xf32> to vector<1x1xf32>
    %c0_16 = arith.constant 0 : index
    %c0_17 = arith.constant 0 : index
    %21 = vector.load %arg10[%c0_16, %c0_17] : memref<1x1xf32, #tpu.memory_space<vmem>>, vector<1x1xf32>
    %22 = arith.maximumf %21, %20 : vector<1x1xf32>
    %23 = arith.subf %21, %22 : vector<1x1xf32>
    %24 = math.exp %23 : vector<1x1xf32>
    %25 = vector.broadcast %13 : vector<8x1xf32> to vector<8x128xf32>
    %26 = arith.subf %16, %25 : vector<8x128xf32>
    %27 = vector.broadcast %22 : vector<1x1xf32> to vector<8x128xf32>
    %28 = arith.subf %26, %27 : vector<8x128xf32>
    %29 = math.exp %28 : vector<8x128xf32>
    %c0_18 = arith.constant 0 : index
    %c0_19 = arith.constant 0 : index
    %c0_20 = arith.constant 0 : index
    %c0_21 = arith.constant 0 : index
    %30 = vector.load %arg7[%c0_18, %c0_19, %c0_20, %c0_21] : memref<1x1x128x32xf32, #tpu.memory_space<vmem>>, vector<1x1x128x32xf32>
    %31 = vector.shape_cast %30 : vector<1x1x128x32xf32> to vector<128x32xf32>
    %32 = vector.broadcast %24 : vector<1x1xf32> to vector<128x32xf32>
    %33 = arith.mulf %31, %32 : vector<128x32xf32>
    %cst_22 = arith.constant dense<0.000000e+00> : vector<128x32xf32>
    %34 = tpu.matmul %29, %6, %cst_22 {dimension_numbers = #tpu.dot_dimension_numbers<[0], [0], [1], [1], [0, 1, 1, 1], [], []>} : vector<8x128xf32>, vector<8x32xf32>, vector<128x32xf32> -> vector<128x32xf32>
    %35 = arith.addf %33, %34 : vector<128x32xf32>
    %c0_23 = arith.constant 0 : index
    %c0_24 = arith.constant 0 : index
    %c0_25 = arith.constant 0 : index
    %c0_26 = arith.constant 0 : index
    %36 = vector.load %arg7[%c0_23, %c0_24, %c0_25, %c0_26] : memref<1x1x128x32xf32, #tpu.memory_space<vmem>>, vector<1x1x128x32xf32>
    %37 = vector.shape_cast %36 : vector<1x1x128x32xf32> to vector<128x32xf32>
    %38 = vector.shape_cast %35 : vector<128x32xf32> to vector<1x1x128x32xf32>
    tpu.vector_store %arg7[%c0_23, %c0_24, %c0_25, %c0_26], %38 {strides = array<i32>} : memref<1x1x128x32xf32, #tpu.memory_space<vmem>>, vector<1x1x128x32xf32>,
    %c0_27 = arith.constant 0 : index
    %c0_28 = arith.constant 0 : index
    %c0_29 = arith.constant 0 : index
    %c0_30 = arith.constant 0 : index
    %39 = vector.load %arg8[%c0_27, %c0_28, %c0_29, %c0_30] : memref<1x1x1x128xf32, #tpu.memory_space<vmem>>, vector<1x1x1x128xf32>
    %40 = vector.shape_cast %39 : vector<1x1x1x128xf32> to vector<1x128xf32>
    %41 = vector.broadcast %24 : vector<1x1xf32> to vector<1x128xf32>
    %42 = arith.mulf %40, %41 : vector<1x128xf32>
    %cst_31 = arith.constant dense<0.000000e+00> : vector<128xf32>
    %43 = vector.multi_reduction <add>, %29, %cst_31 [0] : vector<8x128xf32> to vector<128xf32>
    %44 = vector.shape_cast %43 : vector<128xf32> to vector<1x128xf32>
    %45 = arith.addf %42, %44 : vector<1x128xf32>
    %c0_32 = arith.constant 0 : index
    %c0_33 = arith.constant 0 : index
    %c0_34 = arith.constant 0 : index
    %c0_35 = arith.constant 0 : index
    %46 = vector.load %arg8[%c0_32, %c0_33, %c0_34, %c0_35] : memref<1x1x1x128xf32, #tpu.memory_space<vmem>>, vector<1x1x1x128xf32>
    %47 = vector.shape_cast %46 : vector<1x1x1x128xf32> to vector<1x128xf32>
    %48 = vector.shape_cast %45 : vector<1x128xf32> to vector<1x1x1x128xf32>
    tpu.vector_store %arg8[%c0_32, %c0_33, %c0_34, %c0_35], %48 {strides = array<i32>} : memref<1x1x1x128xf32, #tpu.memory_space<vmem>>, vector<1x1x1x128xf32>,
    %c0_36 = arith.constant 0 : index
    %c0_37 = arith.constant 0 : index
    %49 = vector.load %arg9[%c0_36, %c0_37] : memref<1x32xf32, #tpu.memory_space<vmem>>, vector<1x32xf32>
    %cst_38 = arith.constant dense<0.000000e+00> : vector<32xf32>
    %50 = vector.multi_reduction <add>, %6, %cst_38 [0] : vector<8x32xf32> to vector<32xf32>
    %51 = vector.shape_cast %50 : vector<32xf32> to vector<1x32xf32>
    %52 = arith.addf %49, %51 : vector<1x32xf32>
    %c0_39 = arith.constant 0 : index
    %c0_40 = arith.constant 0 : index
    %53 = vector.load %arg9[%c0_39, %c0_40] : memref<1x32xf32, #tpu.memory_space<vmem>>, vector<1x32xf32>
    tpu.vector_store %arg9[%c0_39, %c0_40], %52 {strides = array<i32>} : memref<1x32xf32, #tpu.memory_space<vmem>>, vector<1x32xf32>,
    %c0_41 = arith.constant 0 : index
    %c0_42 = arith.constant 0 : index
    %54 = vector.load %arg10[%c0_41, %c0_42] : memref<1x1xf32, #tpu.memory_space<vmem>>, vector<1x1xf32>
    tpu.vector_store %arg10[%c0_41, %c0_42], %22 {strides = array<i32>} : memref<1x1xf32, #tpu.memory_space<vmem>>, vector<1x1xf32>,
    %c0_i32_43 = arith.constant 0 : i32
    %55 = arith.cmpi eq, %arg2, %c0_i32_43 : i32
    %56 = arith.extui %55 : i1 to i32
    %c0_i32_44 = arith.constant 0 : i32
    %57 = arith.cmpi ne, %56, %c0_i32_44 : i32
    scf.if %57 {
      %c0_45 = arith.constant 0 : index
      %c0_46 = arith.constant 0 : index
      %58 = vector.load %arg9[%c0_45, %c0_46] : memref<1x32xf32, #tpu.memory_space<vmem>>, vector<1x32xf32>
      %59 = tpu.iota {dimensions = array<i32: 0>} : vector<128x1xi32>
      %c110_i32 = arith.constant 110 : i32
      %60 = vector.broadcast %c110_i32 : i32 to vector<128x1xi32>
      %61 = arith.cmpi slt, %59, %60 : vector<128x1xi32>
      %62 = arith.extui %61 : vector<128x1xi1> to vector<128x1xi32>
      %63 = arith.sitofp %62 : vector<128x1xi32> to vector<128x1xf32>
      %c0_47 = arith.constant 0 : index
      %c0_48 = arith.constant 0 : index
      %64 = vector.load %arg6[%c0_47, %c0_48] : memref<1x128xf32, #tpu.memory_space<vmem>>, vector<1x128xf32>
      %65 = math.exp %64 : vector<1x128xf32>
      %c0_49 = arith.constant 0 : index
      %c0_50 = arith.constant 0 : index
      %c0_51 = arith.constant 0 : index
      %c0_52 = arith.constant 0 : index
      %66 = vector.load %arg7[%c0_49, %c0_50, %c0_51, %c0_52] : memref<1x1x128x32xf32, #tpu.memory_space<vmem>>, vector<1x1x128x32xf32>
      %67 = vector.shape_cast %66 : vector<1x1x128x32xf32> to vector<128x32xf32>
      %cst_53 = arith.constant 9.99999974E-5 : f32
      %68 = vector.broadcast %cst_53 : f32 to vector<128x1xf32>
      %69 = arith.mulf %68, %63 : vector<128x1xf32>
      %70 = vector.broadcast %69 : vector<128x1xf32> to vector<128x32xf32>
      %71 = vector.broadcast %58 : vector<1x32xf32> to vector<128x32xf32>
      %72 = arith.mulf %70, %71 : vector<128x32xf32>
      %73 = arith.addf %67, %72 : vector<128x32xf32>
      %cst_54 = arith.constant 0.0953462571 : f32
      %74 = vector.broadcast %cst_54 : f32 to vector<128x32xf32>
      %75 = arith.mulf %73, %74 : vector<128x32xf32>
      %c0_55 = arith.constant 0 : index
      %c0_56 = arith.constant 0 : index
      %c0_57 = arith.constant 0 : index
      %c0_58 = arith.constant 0 : index
      %76 = vector.load %arg7[%c0_55, %c0_56, %c0_57, %c0_58] : memref<1x1x128x32xf32, #tpu.memory_space<vmem>>, vector<1x1x128x32xf32>
      %77 = vector.shape_cast %76 : vector<1x1x128x32xf32> to vector<128x32xf32>
      %78 = vector.shape_cast %75 : vector<128x32xf32> to vector<1x1x128x32xf32>
      tpu.vector_store %arg7[%c0_55, %c0_56, %c0_57, %c0_58], %78 {strides = array<i32>} : memref<1x1x128x32xf32, #tpu.memory_space<vmem>>, vector<1x1x128x32xf32>,
      %c0_59 = arith.constant 0 : index
      %c0_60 = arith.constant 0 : index
      %c0_61 = arith.constant 0 : index
      %c0_62 = arith.constant 0 : index
      %79 = vector.load %arg8[%c0_59, %c0_60, %c0_61, %c0_62] : memref<1x1x1x128xf32, #tpu.memory_space<vmem>>, vector<1x1x1x128xf32>
      %80 = vector.shape_cast %79 : vector<1x1x1x128xf32> to vector<1x128xf32>
      %cst_63 = arith.constant 8.000000e-04 : f32
      %81 = vector.broadcast %cst_63 : f32 to vector<1x128xf32>
      %82 = arith.mulf %81, %65 : vector<1x128xf32>
      %83 = arith.addf %80, %82 : vector<1x128xf32>
      %cst_64 = arith.constant 0.0953462571 : f32
      %84 = vector.broadcast %cst_64 : f32 to vector<1x128xf32>
      %85 = arith.mulf %83, %84 : vector<1x128xf32>
      %c0_65 = arith.constant 0 : index
      %c0_66 = arith.constant 0 : index
      %c0_67 = arith.constant 0 : index
      %c0_68 = arith.constant 0 : index
      %86 = vector.load %arg8[%c0_65, %c0_66, %c0_67, %c0_68] : memref<1x1x1x128xf32, #tpu.memory_space<vmem>>, vector<1x1x1x128xf32>
      %87 = vector.shape_cast %86 : vector<1x1x1x128xf32> to vector<1x128xf32>
      %88 = vector.shape_cast %85 : vector<1x128xf32> to vector<1x1x1x128xf32>
      tpu.vector_store %arg8[%c0_65, %c0_66, %c0_67, %c0_68], %88 {strides = array<i32>} : memref<1x1x1x128xf32, #tpu.memory_space<vmem>>, vector<1x1x1x128xf32>,
    } else {
    }
    return
  }
  func.func @transform_0(%arg0: i32, %arg1: i32, %arg2: i32) -> (i32, i32, i32, i32) {
    %c0_i32 = arith.constant 0 : i32
    %c0_i32_0 = arith.constant 0 : i32
    return %arg0, %arg1, %arg2, %c0_i32 : i32, i32, i32, i32
  }
  func.func @transform_1(%arg0: i32, %arg1: i32, %arg2: i32) -> (i32, i32, i32, i32) {
    %c0_i32 = arith.constant 0 : i32
    %c0_i32_0 = arith.constant 0 : i32
    return %arg0, %arg1, %arg2, %c0_i32 : i32, i32, i32, i32
  }
  func.func @transform_2(%arg0: i32, %arg1: i32, %arg2: i32) -> (i32, i32) {
    %c0_i32 = arith.constant 0 : i32
    %c0_i32_0 = arith.constant 0 : i32
    %c0_i32_1 = arith.constant 0 : i32
    return %c0_i32, %c0_i32_0 : i32, i32
  }
  func.func @transform_3(%arg0: i32, %arg1: i32, %arg2: i32) -> (i32, i32) {
    %c0_i32 = arith.constant 0 : i32
    %c0_i32_0 = arith.constant 0 : i32
    %c0_i32_1 = arith.constant 0 : i32
    return %c0_i32, %c0_i32_0 : i32, i32
  }
  func.func @transform_4(%arg0: i32, %arg1: i32, %arg2: i32) -> (i32, i32, i32, i32) {
    %c0_i32 = arith.constant 0 : i32
    %c0_i32_0 = arith.constant 0 : i32
    %c0_i32_1 = arith.constant 0 : i32
    return %arg0, %arg1, %c0_i32, %c0_i32_0 : i32, i32, i32, i32
  }
  func.func @transform_5(%arg0: i32, %arg1: i32, %arg2: i32) -> (i32, i32, i32, i32) {
    %c0_i32 = arith.constant 0 : i32
    %c0_i32_0 = arith.constant 0 : i32
    %c0_i32_1 = arith.constant 0 : i32
    return %arg0, %arg1, %c0_i32, %c0_i32_0 : i32, i32, i32, i32
  }
}

</mosaic_0001>

<llo_original>
// kernel: tpu_custom_call.1
$region0: #{tpu_custom_call.1}
  #allocation0 [shape = 'u32[]', space=smem, size = 0x4, offset = 0x4, fixed_abs, tag = 'smem constant byte address 0x4 - core index']
  #allocation1 [shape = 'u32[144,128]{1,0:T(1,128)}', space=vmem, size = 0x12000, scoped, tag = 'internal scratch']
  #allocation2 [shape = 'f32[1,32]{1,0:T(1,128)}', space=vmem, size = 0x200, scoped, tag = 'scratch operand']
  #allocation3 [shape = 'f32[1,1]{1,0:T(1,128)}', space=vmem, size = 0x200, scoped, tag = 'scratch operand']
  %s0 = inlined_call_operand.hbm [shape: f32[2,2,8,32], index: 0, kind: input, shape index: {}]
  %s1 = inlined_call_operand.hbm [shape: f32[2,2,8,32], index: 1, kind: input, shape index: {}]
  %s2 = inlined_call_operand.hbm [shape: f32[32,128], index: 2, kind: input, shape index: {}]
  %s3 = inlined_call_operand.vmem [shape: f32[1,128], index: 3, kind: input, shape index: {}]
  %s4 = inlined_call_operand.vmem [shape: f32[2,2,128,32], index: 4, kind: output, shape index: {0}]
  %s5 = inlined_call_operand.hbm [shape: f32[2,2,1,128], index: 5, kind: output, shape index: {1}]
  %6 = xla_tuple %s4, %s5
  %s7 = sld [smem:[#allocation0]]
  $region77: #{tpu_custom_call.1} parent=0
    _
  %s9 = ssub.s32 1, %s7
  %s10 = scalar_select 0, %s9, %s7
  $region1: #{tpu_custom_call.1} parent=0
    #allocation4 [shape = 'u8[8192]{0}', space=vmem, size = 0x2000, scoped, tag = 'input window, operand 0']
    #allocation5 [shape = 's32[2]{0}', space=sflag, size = 0x8, scoped, tag = 'scoped memory for tpu_custom_call.1']
    #allocation6 [shape = 's32[2]{0}', space=sflag, size = 0x8, scoped, tag = 'scoped memory for tpu_custom_call.1']
    #allocation7 [shape = 'u8[8192]{0}', space=vmem, size = 0x2000, scoped, tag = 'input window, operand 1']
    #allocation8 [shape = 's32[2]{0}', space=sflag, size = 0x8, scoped, tag = 'scoped memory for tpu_custom_call.1']
    #allocation9 [shape = 'u8[16384]{0}', space=vmem, size = 0x4000, scoped, tag = 'input window, operand 2, single buffered']
    #allocation10 [shape = 'u8[1024]{0}', space=vmem, size = 0x400, scoped, tag = 'output window, operand 1']
    %11 = vsyncpa [#allocation5], 0
    %s12 = scalar_lea.sflag [#allocation5], 1
    %13 = vsyncpa %s12, 0
    %14 = vsyncpa [#allocation8], 0
    %s15 = scalar_lea.sflag [#allocation8], 1
    %16 = vsyncpa %s15, 0
    %17 = vsyncpa [#allocation6], 0
    %s18 = scalar_lea.sflag [#allocation6], 1
    %19 = vsyncpa %s18, 0
    loop: start=0, step=1, limit=6
    $region2: #{tpu_custom_call.1} parent=1 // loop_pre_header
      _
    $region3: #{tpu_custom_call.1} parent=1 // loop_header
      %s21 = sphi 0, %s25
      %p22 = scmp.ge.s32.totalorder %s21, 6
      %s28 = sphi 0, %s47
      %s29 = sphi 0, %s43
      %s30 = sphi 0, %s39
      %s31 = sphi 0, %s28
      %s32 = sphi 0, %s29
      %s33 = sphi 0, %s30
      %s34 = sphi 0, %s31
      %s35 = sphi 0, %s32
      %s36 = sphi 0, %s33
      %s54 = sphi 0, %s56
      %s57 = sphi 0, %s54
      %s58 = sphi 0, %s57
      %s74 = sphi 0, %s58
      %s84 = sphi 0, %s86
      %s87 = sphi 0, %s84
      %s88 = sphi 0, %s87
      %s104 = sphi 0, %s88
      %s108 = sphi 0, %s108
      %s110 = sphi 0, %s108
      %s111 = sphi 0, %s110
      %s125 = sphi 0, %s111
      %s129 = sphi 0, %s129
      %s131 = sphi 0, %s129
      %s132 = sphi 0, %s131
      %s146 = sphi 0, %s132
      %s154 = sphi 0, %s156
      %s157 = sphi 0, %s154
      %s158 = sphi 0, %s157
      %s174 = sphi 0, %s158
      %s182 = sphi 0, %s184
      %s185 = sphi 0, %s182
      %s186 = sphi 0, %s185
      %s202 = sphi 0, %s186
    $region4: #{tpu_custom_call.1} parent=1 // loop_header_branch
      %24 = sbr.rel (%p22) target = $region8
    $region5: #{tpu_custom_call.1} parent=1 // loop_body
      %s26 = ssub.s32 %s21, 1
      %s27 = ssub.s32 %s21, 2
      %s37 = sadd.s32 1, %s30
      %p38 = scmp.ge.s32.totalorder %s37, 1
      %s39 = scalar_select %p38, 0, %s37
      %s40 = sadd.s32 1, %s29
      %s41 = scalar_select %p38, %s40, %s29
      %p42 = scmp.ge.s32.totalorder %s41, 2
      %s43 = scalar_select %p42, 0, %s41
      %s44 = sadd.s32 1, %s28
      %s45 = scalar_select %p42, %s44, %s28
      %p46 = scmp.ge.s32.totalorder %s45, 2
      %s47 = scalar_select %p46, 0, %s45
      %s48 = ssub.s32 %s28, %s47
      %s49 = ssub.s32 %s29, %s43
      %s50 = sor.u32 %s48, %s49
      %s51 = ssub.s32 %s30, %s39
      %s52 = sor.u32 %s50, %s51
      %p53 = scmp.eq.s32.totalorder %s52, 0
      %s55 = sadd.s32 %s54, 1
      %s56 = scalar_select %p53, %s54, %s55
      %p59 = pneg %p53
      %p60 = scmp.eq.s32.totalorder %s21, 3
      %p61 = por %p59, %p60
      %p62 = scmp.ne.s32.totalorder %s54, %s57
      %p63 = scmp.eq.s32.totalorder %s21, 0
      %p64 = por %p62, %p63
      %p65 = scmp.ne.s32.totalorder %s54, %s57
      %p66 = scmp.eq.s32.totalorder %s26, 3
      %p67 = por %p65, %p66
      %p68 = scmp.ne.s32.totalorder %s57, %s58
      %p69 = scmp.eq.s32.totalorder %s26, 0
      %p70 = por %p68, %p69
      %p71 = scmp.ne.s32.totalorder %s57, %s58
      %p72 = scmp.eq.s32.totalorder %s27, 3
      %p73 = por %p71, %p72
      %p75 = scmp.ne.s32.totalorder %s58, %s74
      %p76 = scmp.eq.s32.totalorder %s27, 0
      %p77 = por %p75, %p76
      %s78 = ssub.s32 %s28, %s47
      %s79 = ssub.s32 %s29, %s43
      %s80 = sor.u32 %s78, %s79
      %s81 = ssub.s32 %s30, %s39
      %s82 = sor.u32 %s80, %s81
      %p83 = scmp.eq.s32.totalorder %s82, 0
      %s85 = sadd.s32 %s84, 1
      %s86 = scalar_select %p83, %s84, %s85
      %p89 = pneg %p83
      %p90 = scmp.eq.s32.totalorder %s21, 3
      %p91 = por %p89, %p90
      %p92 = scmp.ne.s32.totalorder %s84, %s87
      %p93 = scmp.eq.s32.totalorder %s21, 0
      %p94 = por %p92, %p93
      %p95 = scmp.ne.s32.totalorder %s84, %s87
      %p96 = scmp.eq.s32.totalorder %s26, 3
      %p97 = por %p95, %p96
      %p98 = scmp.ne.s32.totalorder %s87, %s88
      %p99 = scmp.eq.s32.totalorder %s26, 0
      %p100 = por %p98, %p99
      %p101 = scmp.ne.s32.totalorder %s87, %s88
      %p102 = scmp.eq.s32.totalorder %s27, 3
      %p103 = por %p101, %p102
      %p105 = scmp.ne.s32.totalorder %s88, %s104
      %p106 = scmp.eq.s32.totalorder %s27, 0
      %p107 = por %p105, %p106
      %s109 = sadd.s32 %s108, 1
      %p112 = scmp.eq.s32.totalorder %s21, 3
      %p113 = scmp.ne.s32.totalorder %s108, %s110
      %p114 = scmp.eq.s32.totalorder %s21, 0
      %p115 = por %p113, %p114
      %p116 = scmp.ne.s32.totalorder %s108, %s110
      %p117 = scmp.eq.s32.totalorder %s26, 3
      %p118 = por %p116, %p117
      %p119 = scmp.ne.s32.totalorder %s110, %s111
      %p120 = scmp.eq.s32.totalorder %s26, 0
      %p121 = por %p119, %p120
      %p122 = scmp.ne.s32.totalorder %s110, %s111
      %p123 = scmp.eq.s32.totalorder %s27, 3
      %p124 = por %p122, %p123
      %p126 = scmp.ne.s32.totalorder %s111, %s125
      %p127 = scmp.eq.s32.totalorder %s27, 0
      %p128 = por %p126, %p127
      %s130 = sadd.s32 %s129, 1
      %p133 = scmp.eq.s32.totalorder %s21, 3
      %p134 = scmp.ne.s32.totalorder %s129, %s131
      %p135 = scmp.eq.s32.totalorder %s21, 0
      %p136 = por %p134, %p135
      %p137 = scmp.ne.s32.totalorder %s129, %s131
      %p138 = scmp.eq.s32.totalorder %s26, 3
      %p139 = por %p137, %p138
      %p140 = scmp.ne.s32.totalorder %s131, %s132
      %p141 = scmp.eq.s32.totalorder %s26, 0
      %p142 = por %p140, %p141
      %p143 = scmp.ne.s32.totalorder %s131, %s132
      %p144 = scmp.eq.s32.totalorder %s27, 3
      %p145 = por %p143, %p144
      %p147 = scmp.ne.s32.totalorder %s132, %s146
      %p148 = scmp.eq.s32.totalorder %s27, 0
      %p149 = por %p147, %p148
      %s150 = ssub.s32 %s28, %s47
      %s151 = ssub.s32 %s29, %s43
      %s152 = sor.u32 %s150, %s151
      %p153 = scmp.eq.s32.totalorder %s152, 0
      %s155 = sadd.s32 %s154, 1
      %s156 = scalar_select %p153, %s154, %s155
      %p159 = pneg %p153
      %p160 = scmp.eq.s32.totalorder %s21, 3
      %p161 = por %p159, %p160
      %p162 = scmp.ne.s32.totalorder %s154, %s157
      %p163 = scmp.eq.s32.totalorder %s21, 0
      %p164 = por %p162, %p163
      %p165 = scmp.ne.s32.totalorder %s154, %s157
      %p166 = scmp.eq.s32.totalorder %s26, 3
      %p167 = por %p165, %p166
      %p168 = scmp.ne.s32.totalorder %s157, %s158
      %p169 = scmp.eq.s32.totalorder %s26, 0
      %p170 = por %p168, %p169
      %p171 = scmp.ne.s32.totalorder %s157, %s158
      %p172 = scmp.eq.s32.totalorder %s27, 3
      %p173 = por %p171, %p172
      %p175 = scmp.ne.s32.totalorder %s158, %s174
      %p176 = scmp.eq.s32.totalorder %s27, 0
      %p177 = por %p175, %p176
      %s178 = ssub.s32 %s28, %s47
      %s179 = ssub.s32 %s29, %s43
      %s180 = sor.u32 %s178, %s179
      %p181 = scmp.eq.s32.totalorder %s180, 0
      %s183 = sadd.s32 %s182, 1
      %s184 = scalar_select %p181, %s182, %s183
      %p187 = pneg %p181
      %p188 = scmp.eq.s32.totalorder %s21, 3
      %p189 = por %p187, %p188
      %p190 = scmp.ne.s32.totalorder %s182, %s185
      %p191 = scmp.eq.s32.totalorder %s21, 0
      %p192 = por %p190, %p191
      %p193 = scmp.ne.s32.totalorder %s182, %s185
      %p194 = scmp.eq.s32.totalorder %s26, 3
      %p195 = por %p193, %p194
      %p196 = scmp.ne.s32.totalorder %s185, %s186
      %p197 = scmp.eq.s32.totalorder %s26, 0
      %p198 = por %p196, %p197
      %p199 = scmp.ne.s32.totalorder %s185, %s186
      %p200 = scmp.eq.s32.totalorder %s27, 3
      %p201 = por %p199, %p200
      %p203 = scmp.ne.s32.totalorder %s186, %s202
      %p204 = scmp.eq.s32.totalorder %s27, 0
      %p205 = por %p203, %p204
      %p206 = scmp.le.s32.totalorder 1, %s21
      %p207 = scmp.lt.s32.totalorder %s21, 5
      %p208 = pnand %p206, %p207
      %p209 = pneg %p208
      // Predicated region
      $region9: #{tpu_custom_call.1} parent=5 // pred_check
        _
      $region10: #{tpu_custom_call.1} parent=5 // pred_check_branch
        %211 = sbr.rel (%p208) target = $region12
      $region11: #{tpu_custom_call.1} parent=5 // pred_region
        %s212 = ssub.s32 %s21, 1
        // Predicated region
        $region13: #{tpu_custom_call.1} parent=11 // pred_check
          %p213 = pneg %p121
        $region14: #{tpu_custom_call.1} parent=11 // pred_check_branch
          %215 = sbr.rel (%p213) target = $region16
        $region15: #{tpu_custom_call.1} parent=11 // pred_region
          %s217 = ssub.s32 512, 512
          %218 = vsyncadd [#allocation8], %s217
          %s219 = sshll.u32 [#allocation9], 4
          %s220 = int_to_ptr.vmem [resolvable:$true] %s219
          %225 = dma.hbm_to_vmem [thread:$0]  %s2, 512, %s220, [#allocation8], 128, 128, 8
        $region16: #{tpu_custom_call.1} parent=11 // pred_fallthru
          _
        // Predicated region
        $region17: #{tpu_custom_call.1} parent=11 // pred_check
          %p226 = pneg %p142
        $region18: #{tpu_custom_call.1} parent=11 // pred_check_branch
          %228 = sbr.rel (%p226) target = $region20
        $region19: #{tpu_custom_call.1} parent=11 // pred_region
          _
        $region20: #{tpu_custom_call.1} parent=11 // pred_fallthru
          _
      $region12: #{tpu_custom_call.1} parent=5 // pred_fallthru
        _
      %p229 = scmp.lt.s32.totalorder %s21, 4
      // Predicated region
      $region21: #{tpu_custom_call.1} parent=5 // pred_check
        %p230 = pneg %p229
      $region22: #{tpu_custom_call.1} parent=5 // pred_check_branch
        %232 = sbr.rel (%p230) target = $region24
      $region23: #{tpu_custom_call.1} parent=5 // pred_region
        // Predicated region
        $region25: #{tpu_custom_call.1} parent=23 // pred_check
          %p233 = pneg %p64
        $region26: #{tpu_custom_call.1} parent=23 // pred_check_branch
          %235 = sbr.rel (%p233) target = $region28
        $region27: #{tpu_custom_call.1} parent=23 // pred_region
          %s236 = sand.u32 %s54, 1
          %s237 = scalar_lea.sflag [#allocation5], %s236
          %s238 = sand.u32 %s54, 1
          %s239 = smul.addr %s238, 8
          %s240 = scalar_lea.vmem [#allocation4], %s239
          %s242 = ssub.s32 128, 128
          %243 = vsyncadd %s237, %s242
          %s244 = sadd.s32 %s30, %s29
          %s245 = smul.addr %s28, 2
          %s246 = sadd.s32 %s244, %s245
          %s247 = smul.addr %s246, 128
          %s248 = scalar_lea.hbm %s0, %s247
          %s250 = sshll.u32 %s240, 4
          %s251 = int_to_ptr.vmem [resolvable:$true] %s250
          %253 = dma.hbm_to_vmem [thread:$0]  %s248, 128, %s251, %s237
        $region28: #{tpu_custom_call.1} parent=23 // pred_fallthru
          _
        // Predicated region
        $region29: #{tpu_custom_call.1} parent=23 // pred_check
          %p254 = pneg %p94
        $region30: #{tpu_custom_call.1} parent=23 // pred_check_branch
          %256 = sbr.rel (%p254) target = $region32
        $region31: #{tpu_custom_call.1} parent=23 // pred_region
          %s257 = sand.u32 %s21, 1
          %s258 = scalar_lea.sflag [#allocation8], %s257
          %s259 = sand.u32 %s84, 1
          %s260 = smul.addr %s259, 8
          %s261 = scalar_lea.vmem [#allocation7], %s260
          %s263 = ssub.s32 128, 128
          %264 = vsyncadd %s258, %s263
          %s265 = sadd.s32 %s30, %s29
          %s266 = smul.addr %s28, 2
          %s267 = sadd.s32 %s265, %s266
          %s268 = smul.addr %s267, 128
          %s269 = scalar_lea.hbm %s1, %s268
          %s271 = sshll.u32 %s261, 4
          %s272 = int_to_ptr.vmem [resolvable:$true] %s271
          %274 = dma.hbm_to_vmem [thread:$0]  %s269, 128, %s272, %s258
        $region32: #{tpu_custom_call.1} parent=23 // pred_fallthru
          _
      $region24: #{tpu_custom_call.1} parent=5 // pred_fallthru
        _
      %p275 = scmp.le.s32.totalorder 1, %s21
      %p276 = scmp.lt.s32.totalorder %s21, 5
      %p277 = pnand %p275, %p276
      %p278 = pneg %p277
      // Predicated region
      $region33: #{tpu_custom_call.1} parent=5 // pred_check
        _
      $region34: #{tpu_custom_call.1} parent=5 // pred_check_branch
        %280 = sbr.rel (%p277) target = $region36
      $region35: #{tpu_custom_call.1} parent=5 // pred_region
        %s281 = ssub.s32 %s21, 1
        %s282 = sand.u32 %s57, 1
        %s283 = scalar_lea.sflag [#allocation5], %s282
        %s284 = sand.u32 %s57, 1
        %s285 = smul.addr %s284, 8
        %s286 = scalar_lea.vmem [#allocation4], %s285
        // Predicated region
        $region37: #{tpu_custom_call.1} parent=35 // pred_check
          %p287 = pneg %p70
        $region38: #{tpu_custom_call.1} parent=35 // pred_check_branch
          %289 = sbr.rel (%p287) target = $region40
        $region39: #{tpu_custom_call.1} parent=35 // pred_region
          %290 = dma.done %s283, 128
        $region40: #{tpu_custom_call.1} parent=35 // pred_fallthru
          _
        %s291 = sand.u32 %s26, 1
        %s292 = scalar_lea.sflag [#allocation8], %s291
        %s293 = sand.u32 %s87, 1
        %s294 = smul.addr %s293, 8
        %s295 = scalar_lea.vmem [#allocation7], %s294
        // Predicated region
        $region41: #{tpu_custom_call.1} parent=35 // pred_check
          %p296 = pneg %p100
        $region42: #{tpu_custom_call.1} parent=35 // pred_check_branch
          %298 = sbr.rel (%p296) target = $region44
        $region43: #{tpu_custom_call.1} parent=35 // pred_region
          %299 = dma.done %s292, 128
        $region44: #{tpu_custom_call.1} parent=35 // pred_fallthru
          _
        // Predicated region
        $region45: #{tpu_custom_call.1} parent=35 // pred_check
          %p300 = pneg %p121
        $region46: #{tpu_custom_call.1} parent=35 // pred_check_branch
          %302 = sbr.rel (%p300) target = $region48
        $region47: #{tpu_custom_call.1} parent=35 // pred_region
          %303 = dma.done [#allocation8], 512
        $region48: #{tpu_custom_call.1} parent=35 // pred_fallthru
          _
        %s304 = sand.u32 %s57, 1
        %s305 = scalar_lea.sflag [#allocation5], %s304
        %s306 = sand.u32 %s57, 1
        %s307 = smul.addr %s306, 8
        %s308 = scalar_lea.vmem [#allocation4], %s307
        %p309 = pneg %p70
        %p310 = pneg %p67
        %s311 = sand.u32 %s26, 1
        %s312 = scalar_lea.sflag [#allocation8], %s311
        %s313 = sand.u32 %s87, 1
        %s314 = smul.addr %s313, 8
        %s315 = scalar_lea.vmem [#allocation7], %s314
        %p316 = pneg %p100
        %p317 = pneg %p97
        %p318 = pneg %p121
        %p319 = pneg %p118
        %p320 = pneg %p142
        %p321 = pneg %p139
        %p322 = pneg %p170
        %p323 = pneg %p167
        %p324 = scmp.lt.s32.totalorder %s31, 1
        %s325 = scalar_select %p324, %s31, 1
        %p326 = scmp.lt.s32.totalorder %s32, 1
        %s327 = scalar_select %p326, %s32, 1
        %s328 = smul.addr %s327, 16
        %s329 = smul.addr %s325, 32
        %s330 = sadd.s32 %s328, %s329
        %s331 = smul.addr %s330, 8
        %s332 = scalar_lea.vmem %s4, %s331
        %p333 = pneg %p198
        %p334 = pneg %p195
        %s335 = sand.u32 %s185, 1
        %s336 = scalar_lea.sflag [#allocation6], %s335
        %s337 = sand.u32 %s185, 1
        %s338 = scalar_lea.vmem [#allocation10], %s337
        %p339 = scmp.lt.s32.totalorder %s31, 1
        %s340 = scalar_select %p339, %s31, 1
        %p341 = scmp.lt.s32.totalorder %s32, 1
        %s342 = scalar_select %p341, %s32, 1
        %s343 = smul.addr %s342, 16
        %s344 = smul.addr %s340, 32
        %s345 = sadd.s32 %s343, %s344
        %s346 = smul.addr %s345, 8
        %s347 = scalar_lea.vmem %s4, %s346
        %p348 = scmp.eq.s32.totalorder %s33, 0
        // Predicated region
        $region49: #{tpu_custom_call.1} parent=35 // pred_check
          %p349 = pneg %p348
        $region50: #{tpu_custom_call.1} parent=35 // pred_check_branch
          %351 = sbr.rel (%p349) target = $region52
        $region51: #{tpu_custom_call.1} parent=35 // pred_region
          %vm352 = vcmask 0
          %353 = vst.msk [vmem:[#allocation3] sm:$0x1] %vm352, -inf
          %vm354 = vcmask 253952
          %355 = vst.msk [vmem:[#allocation2] sm:$0x1] %vm354, 0.0
          %vm356 = vcmask 261120
          %357 = vst.msk [vmem:[%s347] sm:$0xff] %vm356, 0.0
          %358 = vst.msk [vmem:[%s347 + $0x8] sm:$0xff] %vm356, 0.0
          %359 = vst.msk [vmem:[%s347 + $0x10] sm:$0xff] %vm356, 0.0
          %360 = vst.msk [vmem:[%s347 + $0x18] sm:$0xff] %vm356, 0.0
          %361 = vst.msk [vmem:[%s347 + $0x20] sm:$0xff] %vm356, 0.0
          %362 = vst.msk [vmem:[%s347 + $0x28] sm:$0xff] %vm356, 0.0
          %363 = vst.msk [vmem:[%s347 + $0x30] sm:$0xff] %vm356, 0.0
          %364 = vst.msk [vmem:[%s347 + $0x38] sm:$0xff] %vm356, 0.0
          %365 = vst.msk [vmem:[%s347 + $0x40] sm:$0xff] %vm356, 0.0
          %366 = vst.msk [vmem:[%s347 + $0x48] sm:$0xff] %vm356, 0.0
          %367 = vst.msk [vmem:[%s347 + $0x50] sm:$0xff] %vm356, 0.0
          %368 = vst.msk [vmem:[%s347 + $0x58] sm:$0xff] %vm356, 0.0
          %369 = vst.msk [vmem:[%s347 + $0x60] sm:$0xff] %vm356, 0.0
          %370 = vst.msk [vmem:[%s347 + $0x68] sm:$0xff] %vm356, 0.0
          %371 = vst.msk [vmem:[%s347 + $0x70] sm:$0xff] %vm356, 0.0
          %372 = vst.msk [vmem:[%s347 + $0x78] sm:$0xff] %vm356, 0.0
          %373 = vst [vmem:[%s338] sm:$0x1] 0.0
        $region52: #{tpu_custom_call.1} parent=35 // pred_fallthru
          _
        %v374 = vld [vmem:[%s286] sm:$0xff]
        %v375 = vld [vmem:[%s295] sm:$0xff]
        %v376 = vld [vmem:[#allocation9] sm:$0xff]
        %v377 = vld [vmem:[#allocation9 + $0x8] sm:$0xff]
        %v378 = vld [vmem:[#allocation9 + $0x10] sm:$0xff]
        %v379 = vld [vmem:[#allocation9 + $0x18] sm:$0xff]
        %v380 = vmul.f32 %v374, %v374
        %vm381 = vcmask 261120
        %v382 = vsel %vm381, %v380, 0.0
        %383 = vadd.xlane.f32.xlu0 %v382
        %v384 = vpop.xlane.xlu0 %383
        %v385 = vmul.f32 %v384, 0.088388346
        %v386 = vld [vmem:[%s3] sm:$0x1]
        %v388 = vlaneseq
        %v389 = vshrl.u32 %v388, 7
        %v390 = vsub.s32 0, %v389
        %v391 = vrot.slane %v386, %v390
        %v394 = vsel %vm381, %v374, 0
        %396 = vmatprep.subr.mxu0 0.0
        %397 = vmatpush1.msra.mxu0 %v376
        %398 = vmatprep.subr.mxu0 0.0
        %399 = vmatpush1.msra.mxu0 %v377
        %400 = vmatprep.subr.mxu0 0.0
        %401 = vmatpush1.msra.mxu0 %v378
        %402 = vmatprep.subr.mxu0 0.0
        %403 = vmatpush1.msra.mxu0 %v379
        %404 = vmatprep.subr.mxu0 0.0
        %405 = vmatpush1.msra.mxu0 0.0
        %406 = vmatprep.subr.mxu0 0.0
        %407 = vmatpush1.msra.mxu0 0.0
        %408 = vmatprep.subr.mxu0 0.0
        %409 = vmatpush1.msra.mxu0 0.0
        %410 = vmatprep.subr.mxu0 0.0
        %411 = vmatpush1.msra.mxu0 0.0
        %412 = vmatprep.subr.mxu0 0.0
        %413 = vmatpush1.msra.mxu0 0.0
        %414 = vmatprep.subr.mxu0 0.0
        %415 = vmatpush1.msra.mxu0 0.0
        %416 = vmatprep.subr.mxu0 0.0
        %417 = vmatpush1.msra.mxu0 0.0
        %418 = vmatprep.subr.mxu0 0.0
        %419 = vmatpush1.msra.mxu0 0.0
        %420 = vmatprep.subr.mxu0 0.0
        %421 = vmatpush1.msra.mxu0 0.0
        %422 = vmatprep.subr.mxu0 0.0
        %423 = vmatpush1.msra.mxu0 0.0
        %424 = vmatprep.subr.mxu0 0.0
        %425 = vmatpush1.msra.mxu0 0.0
        %426 = vmatprep.subr.mxu0 0.0
        %427 = vmatpush1.msra.mxu0 0.0
        %428 = vmatprep.subr.mxu0 0.0
        %429 = vmatpush1.msra.mxu0 0.0
        %430 = vmatprep.subr.mxu0 0.0
        %431 = vmatpush1.msra.mxu0 0.0
        %432 = vmatprep.subr.mxu0 0.0
        %433 = vmatpush1.msra.mxu0 0.0
        %434 = vmatprep.subr.mxu0 0.0
        %435 = vmatpush1.msra.mxu0 0.0
        %436 = vmatprep.subr.mxu0 0.0
        %437 = vmatpush1.msra.mxu0 0.0
        %438 = vmatprep.subr.mxu0 0.0
        %439 = vmatpush1.msra.mxu0 0.0
        %440 = vmatprep.subr.mxu0 0.0
        %441 = vmatpush1.msra.mxu0 0.0
        %442 = vmatprep.subr.mxu0 0.0
        %443 = vmatpush1.msra.mxu0 0.0
        %444 = vmatprep.subr.mxu0 0.0
        %445 = vmatpush1.msra.mxu0 0.0
        %446 = vmatprep.subr.mxu0 0.0
        %447 = vmatpush1.msra.mxu0 0.0
        %448 = vmatprep.subr.mxu0 0.0
        %449 = vmatpush1.msra.mxu0 0.0
        %450 = vmatprep.subr.mxu0 0.0
        %451 = vmatpush1.msra.mxu0 0.0
        %452 = vmatprep.subr.mxu0 0.0
        %453 = vmatpush1.msra.mxu0 0.0
        %454 = vmatprep.subr.mxu0 0.0
        %455 = vmatpush1.msra.mxu0 0.0
        %456 = vmatprep.subr.mxu0 0.0
        %457 = vmatpush1.msra.mxu0 0.0
        %458 = vmatprep.subr.mxu0 0.0
        %459 = vmatpush1.msra.mxu0 0.0
        %460 = vmatprep.mubr.f32.mxu0 0.0
        %461 = vmatmul.mubr.f32.gmra.mrb[0].mxu0 %v394
        %v462 = vpop.f32.mrb[0].mxu0
        %v463 = vadd.f32 %v391, %v462
        %v464 = vpop.f32.mrb[0].mxu0
        %465 = vdwg.mxu0
        %466 = vmax.xlane.f32.xlu0 %v463
        %v467 = vpop.xlane.xlu0 %466
        %v468 = vrot.slane %v467, 4
        %v469 = vmax.f32 %v467, %v468
        %v470 = vrot.slane %v469, 2
        %v471 = vmax.f32 %v469, %v470
        %v472 = vrot.slane %v471, 1
        %v473 = vmax.f32 %v471, %v472
        %v474 = vld [vmem:[#allocation3] sm:$0x1]
        %v475 = vmax.f32 %v474, %v473
        %v476 = vsub.f32 %v474, %v475
        %v477 = vmul.f32 %v476, 1.442695
        %v478 = vpow.pop %v477
        %v479 = vsub.f32 %v463, %v385
        %v481 = vlaneseq
        %v482 = vshrl.u32 %v481, 7
        %v483 = vsub.s32 0, %v482
        %v484 = vrot.slane %v475, %v483
        %485 = vset.pattern.permute.xlu0 0
        %486 = vperm.xlu0 %485, %v484
        %v487 = vpop.permute.xlu0 %486
        %v489 = vsub.f32 %v479, %v487
        %v490 = vmul.f32 %v489, 1.442695
        %v491 = vpow.pop %v490
        %v492 = vld [vmem:[%s347] sm:$0xff]
        %v493 = vld [vmem:[%s347 + $0x8] sm:$0xff]
        %v494 = vld [vmem:[%s347 + $0x10] sm:$0xff]
        %v495 = vld [vmem:[%s347 + $0x18] sm:$0xff]
        %v496 = vld [vmem:[%s347 + $0x20] sm:$0xff]
        %v497 = vld [vmem:[%s347 + $0x28] sm:$0xff]
        %v498 = vld [vmem:[%s347 + $0x30] sm:$0xff]
        %v499 = vld [vmem:[%s347 + $0x38] sm:$0xff]
        %v500 = vld [vmem:[%s347 + $0x40] sm:$0xff]
        %v501 = vld [vmem:[%s347 + $0x48] sm:$0xff]
        %v502 = vld [vmem:[%s347 + $0x50] sm:$0xff]
        %v503 = vld [vmem:[%s347 + $0x58] sm:$0xff]
        %v504 = vld [vmem:[%s347 + $0x60] sm:$0xff]
        %v505 = vld [vmem:[%s347 + $0x68] sm:$0xff]
        %v506 = vld [vmem:[%s347 + $0x70] sm:$0xff]
        %v507 = vld [vmem:[%s347 + $0x78] sm:$0xff]
        %v509 = vlaneseq
        %v510 = vshrl.u32 %v509, 7
        %v511 = vsub.s32 0, %v510
        %v512 = vrot.slane %v478, %v511
        %513 = vset.pattern.permute.xlu0 0
        %514 = vperm.xlu0 %513, %v512
        %v515 = vpop.permute.xlu0 %514
        %v517 = vmul.f32 %v492, %v515
        %v518 = vmul.f32 %v493, %v515
        %v519 = vmul.f32 %v494, %v515
        %v520 = vmul.f32 %v495, %v515
        %v521 = vmul.f32 %v496, %v515
        %v522 = vmul.f32 %v497, %v515
        %v523 = vmul.f32 %v498, %v515
        %v524 = vmul.f32 %v499, %v515
        %v525 = vmul.f32 %v500, %v515
        %v526 = vmul.f32 %v501, %v515
        %v527 = vmul.f32 %v502, %v515
        %v528 = vmul.f32 %v503, %v515
        %v529 = vmul.f32 %v504, %v515
        %v530 = vmul.f32 %v505, %v515
        %v531 = vmul.f32 %v506, %v515
        %v532 = vmul.f32 %v507, %v515
        %533 = vxpose.xlu0.b32.start [1/16] %v491, 128
        %534 = vxpose.xlu0.b32.cont [2/16] 0.0, 128
        %535 = vxpose.xlu0.b32.cont [3/16] 0.0, 128
        %536 = vxpose.xlu0.b32.cont [4/16] 0.0, 128
        %537 = vxpose.xlu0.b32.cont [5/16] 0.0, 128
        %538 = vxpose.xlu0.b32.cont [6/16] 0.0, 128
        %539 = vxpose.xlu0.b32.cont [7/16] 0.0, 128
        %540 = vxpose.xlu0.b32.cont [8/16] 0.0, 128
        %541 = vxpose.xlu0.b32.cont [9/16] 0.0, 128
        %542 = vxpose.xlu0.b32.cont [10/16] 0.0, 128
        %543 = vxpose.xlu0.b32.cont [11/16] 0.0, 128
        %544 = vxpose.xlu0.b32.cont [12/16] 0.0, 128
        %545 = vxpose.xlu0.b32.cont [13/16] 0.0, 128
        %546 = vxpose.xlu0.b32.cont [14/16] 0.0, 128
        %547 = vxpose.xlu0.b32.cont [15/16] 0.0, 128
        %548 = vxpose.xlu0.b32.end [16/16] 0.0, 128
        %v549 = vpop.trf.xlu0
        %v550 = vpop.trf.xlu0
        %v551 = vpop.trf.xlu0
        %v552 = vpop.trf.xlu0
        %v553 = vpop.trf.xlu0
        %v554 = vpop.trf.xlu0
        %v555 = vpop.trf.xlu0
        %v556 = vpop.trf.xlu0
        %v557 = vpop.trf.xlu0
        %v558 = vpop.trf.xlu0
        %v559 = vpop.trf.xlu0
        %v560 = vpop.trf.xlu0
        %v561 = vpop.trf.xlu0
        %v562 = vpop.trf.xlu0
        %v563 = vpop.trf.xlu0
        %v564 = vpop.trf.xlu0
        %vm565 = vcmask 64512
        %v567 = vsel %vm565, %v549, 0
        %v570 = vsel %vm565, %v550, 0
        %v573 = vsel %vm565, %v551, 0
        %v576 = vsel %vm565, %v552, 0
        %v579 = vsel %vm565, %v553, 0
        %v582 = vsel %vm565, %v554, 0
        %v585 = vsel %vm565, %v555, 0
        %v588 = vsel %vm565, %v556, 0
        %v591 = vsel %vm565, %v557, 0
        %v594 = vsel %vm565, %v558, 0
        %v597 = vsel %vm565, %v559, 0
        %v600 = vsel %vm565, %v560, 0
        %v603 = vsel %vm565, %v561, 0
        %v606 = vsel %vm565, %v562, 0
        %v609 = vsel %vm565, %v563, 0
        %v612 = vsel %vm565, %v564, 0
        %614 = vmatprep.subr.mxu0 0.0
        %615 = vmatpush1.msra.mxu0 %v375
        %616 = vmatprep.subr.mxu0 0.0
        %617 = vmatpush1.msra.mxu0 0.0
        %618 = vmatprep.subr.mxu0 0.0
        %619 = vmatpush1.msra.mxu0 0.0
        %620 = vmatprep.subr.mxu0 0.0
        %621 = vmatpush1.msra.mxu0 0.0
        %622 = vmatprep.subr.mxu0 0.0
        %623 = vmatpush1.msra.mxu0 0.0
        %624 = vmatprep.subr.mxu0 0.0
        %625 = vmatpush1.msra.mxu0 0.0
        %626 = vmatprep.subr.mxu0 0.0
        %627 = vmatpush1.msra.mxu0 0.0
        %628 = vmatprep.subr.mxu0 0.0
        %629 = vmatpush1.msra.mxu0 0.0
        %630 = vmatprep.subr.mxu0 0.0
        %631 = vmatpush1.msra.mxu0 0.0
        %632 = vmatprep.subr.mxu0 0.0
        %633 = vmatpush1.msra.mxu0 0.0
        %634 = vmatprep.subr.mxu0 0.0
        %635 = vmatpush1.msra.mxu0 0.0
        %636 = vmatprep.subr.mxu0 0.0
        %637 = vmatpush1.msra.mxu0 0.0
        %638 = vmatprep.subr.mxu0 0.0
        %639 = vmatpush1.msra.mxu0 0.0
        %640 = vmatprep.subr.mxu0 0.0
        %641 = vmatpush1.msra.mxu0 0.0
        %642 = vmatprep.subr.mxu0 0.0
        %643 = vmatpush1.msra.mxu0 0.0
        %644 = vmatprep.subr.mxu0 0.0
        %645 = vmatpush1.msra.mxu0 0.0
        %646 = vmatprep.subr.mxu0 0.0
        %647 = vmatpush1.msra.mxu0 0.0
        %648 = vmatprep.subr.mxu0 0.0
        %649 = vmatpush1.msra.mxu0 0.0
        %650 = vmatprep.subr.mxu0 0.0
        %651 = vmatpush1.msra.mxu0 0.0
        %652 = vmatprep.subr.mxu0 0.0
        %653 = vmatpush1.msra.mxu0 0.0
        %654 = vmatprep.subr.mxu0 0.0
        %655 = vmatpush1.msra.mxu0 0.0
        %656 = vmatprep.subr.mxu0 0.0
        %657 = vmatpush1.msra.mxu0 0.0
        %658 = vmatprep.subr.mxu0 0.0
        %659 = vmatpush1.msra.mxu0 0.0
        %660 = vmatprep.subr.mxu0 0.0
        %661 = vmatpush1.msra.mxu0 0.0
        %662 = vmatprep.subr.mxu0 0.0
        %663 = vmatpush1.msra.mxu0 0.0
        %664 = vmatprep.subr.mxu0 0.0
        %665 = vmatpush1.msra.mxu0 0.0
        %666 = vmatprep.subr.mxu0 0.0
        %667 = vmatpush1.msra.mxu0 0.0
        %668 = vmatprep.subr.mxu0 0.0
        %669 = vmatpush1.msra.mxu0 0.0
        %670 = vmatprep.subr.mxu0 0.0
        %671 = vmatpush1.msra.mxu0 0.0
        %672 = vmatprep.subr.mxu0 0.0
        %673 = vmatpush1.msra.mxu0 0.0
        %674 = vmatprep.subr.mxu0 0.0
        %675 = vmatpush1.msra.mxu0 0.0
        %676 = vmatprep.subr.mxu0 0.0
        %677 = vmatpush1.msra.mxu0 0.0
        %678 = vmatprep.mubr.f32.mxu0 0.0
        %679 = vmatmul.mubr.f32.gmra.mrb[0].mxu0 %v567
        %v680 = vpop.f32.mrb[0].mxu0
        %v681 = vadd.f32 0.0, %v680
        %v682 = vpop.f32.mrb[0].mxu0
        %683 = vmatprep.mubr.f32.mxu0 0.0
        %684 = vmatmul.mubr.f32.gmra.mrb[0].mxu0 %v570
        %v685 = vpop.f32.mrb[0].mxu0
        %v686 = vadd.f32 0.0, %v685
        %v687 = vpop.f32.mrb[0].mxu0
        %688 = vmatprep.mubr.f32.mxu0 0.0
        %689 = vmatmul.mubr.f32.gmra.mrb[0].mxu0 %v573
        %v690 = vpop.f32.mrb[0].mxu0
        %v691 = vadd.f32 0.0, %v690
        %v692 = vpop.f32.mrb[0].mxu0
        %693 = vmatprep.mubr.f32.mxu0 0.0
        %694 = vmatmul.mubr.f32.gmra.mrb[0].mxu0 %v576
        %v695 = vpop.f32.mrb[0].mxu0
        %v696 = vadd.f32 0.0, %v695
        %v697 = vpop.f32.mrb[0].mxu0
        %698 = vmatprep.mubr.f32.mxu0 0.0
        %699 = vmatmul.mubr.f32.gmra.mrb[0].mxu0 %v579
        %v700 = vpop.f32.mrb[0].mxu0
        %v701 = vadd.f32 0.0, %v700
        %v702 = vpop.f32.mrb[0].mxu0
        %703 = vmatprep.mubr.f32.mxu0 0.0
        %704 = vmatmul.mubr.f32.gmra.mrb[0].mxu0 %v582
        %v705 = vpop.f32.mrb[0].mxu0
        %v706 = vadd.f32 0.0, %v705
        %v707 = vpop.f32.mrb[0].mxu0
        %708 = vmatprep.mubr.f32.mxu0 0.0
        %709 = vmatmul.mubr.f32.gmra.mrb[0].mxu0 %v585
        %v710 = vpop.f32.mrb[0].mxu0
        %v711 = vadd.f32 0.0, %v710
        %v712 = vpop.f32.mrb[0].mxu0
        %713 = vmatprep.mubr.f32.mxu0 0.0
        %714 = vmatmul.mubr.f32.gmra.mrb[0].mxu0 %v588
        %v715 = vpop.f32.mrb[0].mxu0
        %v716 = vadd.f32 0.0, %v715
        %v717 = vpop.f32.mrb[0].mxu0
        %718 = vmatprep.mubr.f32.mxu0 0.0
        %719 = vmatmul.mubr.f32.gmra.mrb[0].mxu0 %v591
        %v720 = vpop.f32.mrb[0].mxu0
        %v721 = vadd.f32 0.0, %v720
        %v722 = vpop.f32.mrb[0].mxu0
        %723 = vmatprep.mubr.f32.mxu0 0.0
        %724 = vmatmul.mubr.f32.gmra.mrb[0].mxu0 %v594
        %v725 = vpop.f32.mrb[0].mxu0
        %v726 = vadd.f32 0.0, %v725
        %v727 = vpop.f32.mrb[0].mxu0
        %728 = vmatprep.mubr.f32.mxu0 0.0
        %729 = vmatmul.mubr.f32.gmra.mrb[0].mxu0 %v597
        %v730 = vpop.f32.mrb[0].mxu0
        %v731 = vadd.f32 0.0, %v730
        %v732 = vpop.f32.mrb[0].mxu0
        %733 = vmatprep.mubr.f32.mxu0 0.0
        %734 = vmatmul.mubr.f32.gmra.mrb[0].mxu0 %v600
        %v735 = vpop.f32.mrb[0].mxu0
        %v736 = vadd.f32 0.0, %v735
        %v737 = vpop.f32.mrb[0].mxu0
        %738 = vmatprep.mubr.f32.mxu0 0.0
        %739 = vmatmul.mubr.f32.gmra.mrb[0].mxu0 %v603
        %v740 = vpop.f32.mrb[0].mxu0
        %v741 = vadd.f32 0.0, %v740
        %v742 = vpop.f32.mrb[0].mxu0
        %743 = vmatprep.mubr.f32.mxu0 0.0
        %744 = vmatmul.mubr.f32.gmra.mrb[0].mxu0 %v606
        %v745 = vpop.f32.mrb[0].mxu0
        %v746 = vadd.f32 0.0, %v745
        %v747 = vpop.f32.mrb[0].mxu0
        %748 = vmatprep.mubr.f32.mxu0 0.0
        %749 = vmatmul.mubr.f32.gmra.mrb[0].mxu0 %v609
        %v750 = vpop.f32.mrb[0].mxu0
        %v751 = vadd.f32 0.0, %v750
        %v752 = vpop.f32.mrb[0].mxu0
        %753 = vmatprep.mubr.f32.mxu0 0.0
        %754 = vmatmul.mubr.f32.gmra.mrb[0].mxu0 %v612
        %v755 = vpop.f32.mrb[0].mxu0
        %v756 = vadd.f32 0.0, %v755
        %v757 = vpop.f32.mrb[0].mxu0
        %758 = vdwg.mxu0
        %v759 = vadd.f32 %v517, %v681
        %v760 = vadd.f32 %v518, %v686
        %v761 = vadd.f32 %v519, %v691
        %v762 = vadd.f32 %v520, %v696
        %v763 = vadd.f32 %v521, %v701
        %v764 = vadd.f32 %v522, %v706
        %v765 = vadd.f32 %v523, %v711
        %v766 = vadd.f32 %v524, %v716
        %v767 = vadd.f32 %v525, %v721
        %v768 = vadd.f32 %v526, %v726
        %v769 = vadd.f32 %v527, %v731
        %v770 = vadd.f32 %v528, %v736
        %v771 = vadd.f32 %v529, %v741
        %v772 = vadd.f32 %v530, %v746
        %v773 = vadd.f32 %v531, %v751
        %v774 = vadd.f32 %v532, %v756
        %775 = vst.msk [vmem:[%s347] sm:$0xff] %vm381, %v759
        %776 = vst.msk [vmem:[%s347 + $0x8] sm:$0xff] %vm381, %v760
        %777 = vst.msk [vmem:[%s347 + $0x10] sm:$0xff] %vm381, %v761
        %778 = vst.msk [vmem:[%s347 + $0x18] sm:$0xff] %vm381, %v762
        %779 = vst.msk [vmem:[%s347 + $0x20] sm:$0xff] %vm381, %v763
        %780 = vst.msk [vmem:[%s347 + $0x28] sm:$0xff] %vm381, %v764
        %781 = vst.msk [vmem:[%s347 + $0x30] sm:$0xff] %vm381, %v765
        %782 = vst.msk [vmem:[%s347 + $0x38] sm:$0xff] %vm381, %v766
        %783 = vst.msk [vmem:[%s347 + $0x40] sm:$0xff] %vm381, %v767
        %784 = vst.msk [vmem:[%s347 + $0x48] sm:$0xff] %vm381, %v768
        %785 = vst.msk [vmem:[%s347 + $0x50] sm:$0xff] %vm381, %v769
        %786 = vst.msk [vmem:[%s347 + $0x58] sm:$0xff] %vm381, %v770
        %787 = vst.msk [vmem:[%s347 + $0x60] sm:$0xff] %vm381, %v771
        %788 = vst.msk [vmem:[%s347 + $0x68] sm:$0xff] %vm381, %v772
        %789 = vst.msk [vmem:[%s347 + $0x70] sm:$0xff] %vm381, %v773
        %790 = vst.msk [vmem:[%s347 + $0x78] sm:$0xff] %vm381, %v774
        %v791 = vld [vmem:[%s338] sm:$0x1]
        %792 = vset.pattern.permute.xlu0 0
        %793 = vperm.xlu0 %792, %v478
        %v794 = vpop.permute.xlu0 %793
        %v796 = vlaneseq
        %v797 = vshrl.u32 %v796, 7
        %v798 = vsub.s32 0, %v797
        %v799 = vrot.slane %v794, %v798
        %v800 = vmul.f32 %v791, %v799
        %v801 = vrot.slane %v491, 4
        %v802 = vadd.f32 %v491, %v801
        %v803 = vrot.slane %v802, 2
        %v804 = vadd.f32 %v802, %v803
        %v805 = vrot.slane %v804, 1
        %v806 = vadd.f32 %v804, %v805
        %v807 = vadd.f32 %v800, %v806
        %808 = vst [vmem:[%s338] sm:$0x1] %v807
        %v809 = vld [vmem:[#allocation2] sm:$0x1]
        %v810 = vsel %vm381, %v375, 0.0
        %v811 = vrot.slane %v810, 4
        %v812 = vadd.f32 %v810, %v811
        %v813 = vrot.slane %v812, 2
        %v814 = vadd.f32 %v812, %v813
        %v815 = vrot.slane %v814, 1
        %v816 = vadd.f32 %v814, %v815
        %v817 = vadd.f32 %v809, %v816
        %vm818 = vcmask 253952
        %819 = vst.msk [vmem:[#allocation2] sm:$0x1] %vm818, %v817
        %vm820 = vcmask 0
        %821 = vst.msk [vmem:[#allocation3] sm:$0x1] %vm820, %v475
        // Predicated region
        $region53: #{tpu_custom_call.1} parent=35 // pred_check
          %p822 = pneg %p348
        $region54: #{tpu_custom_call.1} parent=35 // pred_check_branch
          %824 = sbr.rel (%p822) target = $region56
        $region55: #{tpu_custom_call.1} parent=35 // pred_region
          %v825 = vld [vmem:[#allocation2] sm:$0x1]
          %v826 = vlaneseq
          %v827 = vshrl.u32 %v826, 7
          %v828 = vadd.s32 %v827, 8
          %v829 = vadd.s32 %v827, 16
          %v830 = vadd.s32 %v827, 24
          %v831 = vadd.s32 %v827, 32
          %v832 = vadd.s32 %v827, 40
          %v833 = vadd.s32 %v827, 48
          %v834 = vadd.s32 %v827, 56
          %v835 = vadd.s32 %v827, 64
          %v836 = vadd.s32 %v827, 72
          %v837 = vadd.s32 %v827, 80
          %v838 = vadd.s32 %v827, 88
          %v839 = vadd.s32 %v827, 96
          %v840 = vadd.s32 %v827, 104
          %v841 = vadd.s32 %v827, 112
          %v842 = vadd.s32 %v827, 120
          %vm843 = vcmp.lt.s32.totalorder %v827, 110
          %vm844 = vcmp.lt.s32.totalorder %v828, 110
          %vm845 = vcmp.lt.s32.totalorder %v829, 110
          %vm846 = vcmp.lt.s32.totalorder %v830, 110
          %vm847 = vcmp.lt.s32.totalorder %v831, 110
          %vm848 = vcmp.lt.s32.totalorder %v832, 110
          %vm849 = vcmp.lt.s32.totalorder %v833, 110
          %vm850 = vcmp.lt.s32.totalorder %v834, 110
          %vm851 = vcmp.lt.s32.totalorder %v835, 110
          %vm852 = vcmp.lt.s32.totalorder %v836, 110
          %vm853 = vcmp.lt.s32.totalorder %v837, 110
          %vm854 = vcmp.lt.s32.totalorder %v838, 110
          %vm855 = vcmp.lt.s32.totalorder %v839, 110
          %vm856 = vcmp.lt.s32.totalorder %v840, 110
          %vm857 = vcmp.lt.s32.totalorder %v841, 110
          %vm858 = vcmp.lt.s32.totalorder %v842, 110
          %v859 = vsel %vm843, 1, 0
          %v860 = vsel %vm844, 1, 0
          %v861 = vsel %vm845, 1, 0
          %v862 = vsel %vm846, 1, 0
          %v863 = vsel %vm847, 1, 0
          %v864 = vsel %vm848, 1, 0
          %v865 = vsel %vm849, 1, 0
          %v866 = vsel %vm850, 1, 0
          %v867 = vsel %vm851, 1, 0
          %v868 = vsel %vm852, 1, 0
          %v869 = vsel %vm853, 1, 0
          %v870 = vsel %vm854, 1, 0
          %v871 = vsel %vm855, 1, 0
          %v872 = vsel %vm856, 1, 0
          %v873 = vsel %vm857, 1, 0
          %v874 = vsel %vm858, 1, 0
          %v875 = vcvt.s32.f32 %v859
          %v876 = vcvt.s32.f32 %v860
          %v877 = vcvt.s32.f32 %v861
          %v878 = vcvt.s32.f32 %v862
          %v879 = vcvt.s32.f32 %v863
          %v880 = vcvt.s32.f32 %v864
          %v881 = vcvt.s32.f32 %v865
          %v882 = vcvt.s32.f32 %v866
          %v883 = vcvt.s32.f32 %v867
          %v884 = vcvt.s32.f32 %v868
          %v885 = vcvt.s32.f32 %v869
          %v886 = vcvt.s32.f32 %v870
          %v887 = vcvt.s32.f32 %v871
          %v888 = vcvt.s32.f32 %v872
          %v889 = vcvt.s32.f32 %v873
          %v890 = vcvt.s32.f32 %v874
          %v891 = vld [vmem:[%s3] sm:$0x1]
          %v892 = vmul.f32 %v891, 1.442695
          %v893 = vpow.pop %v892
          %v894 = vld [vmem:[%s347] sm:$0xff]
          %v895 = vld [vmem:[%s347 + $0x8] sm:$0xff]
          %v896 = vld [vmem:[%s347 + $0x10] sm:$0xff]
          %v897 = vld [vmem:[%s347 + $0x18] sm:$0xff]
          %v898 = vld [vmem:[%s347 + $0x20] sm:$0xff]
          %v899 = vld [vmem:[%s347 + $0x28] sm:$0xff]
          %v900 = vld [vmem:[%s347 + $0x30] sm:$0xff]
          %v901 = vld [vmem:[%s347 + $0x38] sm:$0xff]
          %v902 = vld [vmem:[%s347 + $0x40] sm:$0xff]
          %v903 = vld [vmem:[%s347 + $0x48] sm:$0xff]
          %v904 = vld [vmem:[%s347 + $0x50] sm:$0xff]
          %v905 = vld [vmem:[%s347 + $0x58] sm:$0xff]
          %v906 = vld [vmem:[%s347 + $0x60] sm:$0xff]
          %v907 = vld [vmem:[%s347 + $0x68] sm:$0xff]
          %v908 = vld [vmem:[%s347 + $0x70] sm:$0xff]
          %v909 = vld [vmem:[%s347 + $0x78] sm:$0xff]
          %v910 = vmul.f32 %v875, 0.0001
          %v911 = vmul.f32 %v876, 0.0001
          %v912 = vmul.f32 %v877, 0.0001
          %v913 = vmul.f32 %v878, 0.0001
          %v914 = vmul.f32 %v879, 0.0001
          %v915 = vmul.f32 %v880, 0.0001
          %v916 = vmul.f32 %v881, 0.0001
          %v917 = vmul.f32 %v882, 0.0001
          %v918 = vmul.f32 %v883, 0.0001
          %v919 = vmul.f32 %v884, 0.0001
          %v920 = vmul.f32 %v885, 0.0001
          %v921 = vmul.f32 %v886, 0.0001
          %v922 = vmul.f32 %v887, 0.0001
          %v923 = vmul.f32 %v888, 0.0001
          %v924 = vmul.f32 %v889, 0.0001
          %v925 = vmul.f32 %v890, 0.0001
          %v927 = vlaneseq
          %v928 = vshrl.u32 %v927, 7
          %v929 = vsub.s32 0, %v928
          %v930 = vrot.slane %v825, %v929
          %v932 = vmul.f32 %v910, %v930
          %v933 = vmul.f32 %v911, %v930
          %v934 = vmul.f32 %v912, %v930
          %v935 = vmul.f32 %v913, %v930
          %v936 = vmul.f32 %v914, %v930
          %v937 = vmul.f32 %v915, %v930
          %v938 = vmul.f32 %v916, %v930
          %v939 = vmul.f32 %v917, %v930
          %v940 = vmul.f32 %v918, %v930
          %v941 = vmul.f32 %v919, %v930
          %v942 = vmul.f32 %v920, %v930
          %v943 = vmul.f32 %v921, %v930
          %v944 = vmul.f32 %v922, %v930
          %v945 = vmul.f32 %v923, %v930
          %v946 = vmul.f32 %v924, %v930
          %v947 = vmul.f32 %v925, %v930
          %v948 = vadd.f32 %v894, %v932
          %v949 = vadd.f32 %v895, %v933
          %v950 = vadd.f32 %v896, %v934
          %v951 = vadd.f32 %v897, %v935
          %v952 = vadd.f32 %v898, %v936
          %v953 = vadd.f32 %v899, %v937
          %v954 = vadd.f32 %v900, %v938
          %v955 = vadd.f32 %v901, %v939
          %v956 = vadd.f32 %v902, %v940
          %v957 = vadd.f32 %v903, %v941
          %v958 = vadd.f32 %v904, %v942
          %v959 = vadd.f32 %v905, %v943
          %v960 = vadd.f32 %v906, %v944
          %v961 = vadd.f32 %v907, %v945
          %v962 = vadd.f32 %v908, %v946
          %v963 = vadd.f32 %v909, %v947
          %v964 = vmul.f32 %v948, 0.09534626
          %v965 = vmul.f32 %v949, 0.09534626
          %v966 = vmul.f32 %v950, 0.09534626
          %v967 = vmul.f32 %v951, 0.09534626
          %v968 = vmul.f32 %v952, 0.09534626
          %v969 = vmul.f32 %v953, 0.09534626
          %v970 = vmul.f32 %v954, 0.09534626
          %v971 = vmul.f32 %v955, 0.09534626
          %v972 = vmul.f32 %v956, 0.09534626
          %v973 = vmul.f32 %v957, 0.09534626
          %v974 = vmul.f32 %v958, 0.09534626
          %v975 = vmul.f32 %v959, 0.09534626
          %v976 = vmul.f32 %v960, 0.09534626
          %v977 = vmul.f32 %v961, 0.09534626
          %v978 = vmul.f32 %v962, 0.09534626
          %v979 = vmul.f32 %v963, 0.09534626
          %980 = vst.msk [vmem:[%s347] sm:$0xff] %vm381, %v964
          %981 = vst.msk [vmem:[%s347 + $0x8] sm:$0xff] %vm381, %v965
          %982 = vst.msk [vmem:[%s347 + $0x10] sm:$0xff] %vm381, %v966
          %983 = vst.msk [vmem:[%s347 + $0x18] sm:$0xff] %vm381, %v967
          %984 = vst.msk [vmem:[%s347 + $0x20] sm:$0xff] %vm381, %v968
          %985 = vst.msk [vmem:[%s347 + $0x28] sm:$0xff] %vm381, %v969
          %986 = vst.msk [vmem:[%s347 + $0x30] sm:$0xff] %vm381, %v970
          %987 = vst.msk [vmem:[%s347 + $0x38] sm:$0xff] %vm381, %v971
          %988 = vst.msk [vmem:[%s347 + $0x40] sm:$0xff] %vm381, %v972
          %989 = vst.msk [vmem:[%s347 + $0x48] sm:$0xff] %vm381, %v973
          %990 = vst.msk [vmem:[%s347 + $0x50] sm:$0xff] %vm381, %v974
          %991 = vst.msk [vmem:[%s347 + $0x58] sm:$0xff] %vm381, %v975
          %992 = vst.msk [vmem:[%s347 + $0x60] sm:$0xff] %vm381, %v976
          %993 = vst.msk [vmem:[%s347 + $0x68] sm:$0xff] %vm381, %v977
          %994 = vst.msk [vmem:[%s347 + $0x70] sm:$0xff] %vm381, %v978
          %995 = vst.msk [vmem:[%s347 + $0x78] sm:$0xff] %vm381, %v979
          %v996 = vld [vmem:[%s338] sm:$0x1]
          %v997 = vmul.f32 %v893, 0.0008
          %v998 = vadd.f32 %v996, %v997
          %v999 = vmul.f32 %v998, 0.09534626
          %1000 = vst [vmem:[%s338] sm:$0x1] %v999
        $region56: #{tpu_custom_call.1} parent=35 // pred_fallthru
          _
        %p1001 = scmp.lt.s32.totalorder %s31, 1
        %s1002 = scalar_select %p1001, %s31, 1
        %p1003 = scmp.lt.s32.totalorder %s32, 1
        %s1004 = scalar_select %p1003, %s32, 1
        %s1005 = smul.addr %s1004, 16
        %s1006 = smul.addr %s1002, 32
        %s1007 = sadd.s32 %s1005, %s1006
        %s1008 = smul.addr %s1007, 8
        %s1009 = scalar_lea.vmem %s4, %s1008
        %s1010 = sand.u32 %s185, 1
        %s1011 = scalar_lea.sflag [#allocation6], %s1010
        %s1012 = sand.u32 %s185, 1
        %s1013 = scalar_lea.vmem [#allocation10], %s1012
        // Predicated region
        $region57: #{tpu_custom_call.1} parent=35 // pred_check
          %p1014 = pneg %p167
        $region58: #{tpu_custom_call.1} parent=35 // pred_check_branch
          %1016 = sbr.rel (%p1014) target = $region60
        $region59: #{tpu_custom_call.1} parent=35 // pred_region
          _
        $region60: #{tpu_custom_call.1} parent=35 // pred_fallthru
          _
        // Predicated region
        $region61: #{tpu_custom_call.1} parent=35 // pred_check
          %p1017 = pneg %p195
        $region62: #{tpu_custom_call.1} parent=35 // pred_check_branch
          %1019 = sbr.rel (%p1017) target = $region64
        $region63: #{tpu_custom_call.1} parent=35 // pred_region
          %s1021 = ssub.s32 16, 16
          %1022 = vsyncadd %s1011, %s1021
          %s1023 = smul.addr %s31, 2
          %s1024 = sadd.s32 %s32, %s1023
          %s1025 = smul.addr %s1024, 16
          %s1026 = scalar_lea.hbm %s5, %s1025
          %s1028 = sshll.u32 %s1013, 4
          %s1029 = int_to_ptr.vmem [resolvable:$true] %s1028
          %1031 = dma.vmem_to_hbm [thread:$0]  %s1029, 16, %s1026, %s1011
        $region64: #{tpu_custom_call.1} parent=35 // pred_fallthru
          _
      $region36: #{tpu_custom_call.1} parent=5 // pred_fallthru
        _
      %p1032 = scmp.le.s32.totalorder 2, %s21
      // Predicated region
      $region65: #{tpu_custom_call.1} parent=5 // pred_check
        %p1033 = pneg %p1032
      $region66: #{tpu_custom_call.1} parent=5 // pred_check_branch
        %1035 = sbr.rel (%p1033) target = $region68
      $region67: #{tpu_custom_call.1} parent=5 // pred_region
        %s1036 = ssub.s32 %s21, 2
        // Predicated region
        $region69: #{tpu_custom_call.1} parent=67 // pred_check
          %p1037 = pneg %p173
        $region70: #{tpu_custom_call.1} parent=67 // pred_check_branch
          %1039 = sbr.rel (%p1037) target = $region72
        $region71: #{tpu_custom_call.1} parent=67 // pred_region
          %p1040 = scmp.lt.s32.totalorder %s34, 1
          %s1041 = scalar_select %p1040, %s34, 1
          %p1042 = scmp.lt.s32.totalorder %s35, 1
          %s1043 = scalar_select %p1042, %s35, 1
          %s1044 = smul.addr %s1043, 16
          %s1045 = smul.addr %s1041, 32
          %s1046 = sadd.s32 %s1044, %s1045
          %s1047 = smul.addr %s1046, 8
          %s1048 = scalar_lea.vmem %s4, %s1047
        $region72: #{tpu_custom_call.1} parent=67 // pred_fallthru
          _
        // Predicated region
        $region73: #{tpu_custom_call.1} parent=67 // pred_check
          %p1049 = pneg %p201
        $region74: #{tpu_custom_call.1} parent=67 // pred_check_branch
          %1051 = sbr.rel (%p1049) target = $region76
        $region75: #{tpu_custom_call.1} parent=67 // pred_region
          %s1052 = sand.u32 %s186, 1
          %s1053 = scalar_lea.sflag [#allocation6], %s1052
          %s1054 = sand.u32 %s186, 1
          %s1055 = scalar_lea.vmem [#allocation10], %s1054
          %1056 = dma.done %s1053, 16
        $region76: #{tpu_custom_call.1} parent=67 // pred_fallthru
          _
      $region68: #{tpu_custom_call.1} parent=5 // pred_fallthru
        _
    $region6: #{tpu_custom_call.1} parent=1 // loop_footer
      %s25 = sadd.s32 1, %s21
    $region7: #{tpu_custom_call.1} parent=1 // loop_footer_branch
      %20 = sbr.rel target = $region3
    $region8: #{tpu_custom_call.1} parent=1 // loop_exit
      _
    %1057 = vsyncpa [#allocation5], 1
    %s1058 = scalar_lea.sflag [#allocation5], 1
    %1059 = vsyncpa %s1058, 1
    %1060 = vsyncpa [#allocation8], 1
    %s1061 = scalar_lea.sflag [#allocation8], 1
    %1062 = vsyncpa %s1061, 1
    %1063 = vsyncpa [#allocation6], 1
    %s1064 = scalar_lea.sflag [#allocation6], 1
    %1065 = vsyncpa %s1064, 1

</llo_original>
